<compile_context>
chip_gen: v7x
topology: tpu7x:2x2x1
jax: 0.10.0
libtpu: 0.0.40
codegen_flags: <defaults>
</compile_context>

<pallas_src>
import jax
import jax.numpy as jnp
from jax import lax
from jax.experimental import pallas as pl
from jax.experimental.pallas import tpu as pltpu

CHANNELS = 3
HEIGHT = 32
WIDTH = 32
NUM_CLASSES = 10

LANE = 128   # lane width: activations / matmul K are zero-padded to this
HALF = 128   # per-parity column block of a conv output (total N = 2*HALF)


# ---------------------------------------------------------------------------
# Fused kernel: conv1+relu+pool -> conv2+relu+pool -> fc1 -> fc2 -> fc3
# ---------------------------------------------------------------------------
def _net_kernel(x_ref, w1_ref, b1_ref, w2_ref, b2_ref,
                wf1_ref, bf1_ref, wf2_ref, bf2_ref, wf3_ref, bf3_ref,
                o_ref):
    f32, bf16 = jnp.float32, jnp.bfloat16

    def row_select(n_out, n_in, parity):
        # (n_out, n_in) 0/1 matrix picking input row 2*t + parity for output t.
        t = lax.broadcasted_iota(jnp.int32, (n_out, n_in), 0)
        p = lax.broadcasted_iota(jnp.int32, (n_out, n_in), 1)
        return (p == 2 * t + parity).astype(bf16)

    def conv_relu_pool(act, w_ref_, b_ref_, kh, h_out, h_pool):
        # act: (h_in, LANE) bf16, columns = w_pos*cin + c (zero padded).
        # Conv along W is baked into the Toeplitz weights; conv along H is the
        # explicit sum over the kh shifted row-slices.
        acc = jnp.dot(act[0:h_out, :], w_ref_[0], preferred_element_type=f32)
        for i in range(1, kh):
            acc += jnp.dot(act[i:i + h_out, :], w_ref_[i],
                           preferred_element_type=f32)
        acc = jnp.maximum(acc + b_ref_[...], 0.0)                 # bias + ReLU
        # W-pool: even-w columns live in [:HALF], odd-w in [HALF:].
        wmax = jnp.maximum(acc[:, 0:HALF], acc[:, HALF:2 * HALF]).astype(bf16)
        # H-pool: pick even/odd rows with 0/1 selection matmuls, then max.
        even = jnp.dot(row_select(h_pool, h_out, 0), wmax,
                       preferred_element_type=f32)
        odd = jnp.dot(row_select(h_pool, h_out, 1), wmax,
                      preferred_element_type=f32)
        return jnp.maximum(even, odd).astype(bf16)                # (h_pool, LANE)

    x2d = x_ref[0].astype(bf16)                                   # (32, 128)

    # conv1: 3x3, 3->6 ch, 30x30 valid output, pooled to 15x15.
    p1 = conv_relu_pool(x2d, w1_ref, b1_ref, kh=3, h_out=30, h_pool=15)
    # conv2: 5x5, 6->16 ch, 11x11 valid output, pooled to 5x5.
    p2 = conv_relu_pool(p1, w2_ref, b2_ref, kh=5, h_out=11, h_pool=5)

    # fc1: the (5, 5, 16) feature map is consumed as a sum of per-row dots
    # (avoids any in-kernel flatten/reshape).
    a = jnp.dot(p2[0:1, :], wf1_ref[0], preferred_element_type=f32)
    for h in range(1, 5):
        a += jnp.dot(p2[h:h + 1, :], wf1_ref[h], preferred_element_type=f32)
    a = jnp.maximum(a + bf1_ref[...], 0.0)                        # (1, 128)

    a = jnp.dot(a.astype(bf16), wf2_ref[...], preferred_element_type=f32)
    a = jnp.maximum(a + bf2_ref[...], 0.0)                        # (1, 128)

    a = jnp.dot(a.astype(bf16), wf3_ref[...], preferred_element_type=f32)
    o_ref[0] = (a + bf3_ref[...]).astype(o_ref.dtype)             # (1, 128)


# ---------------------------------------------------------------------------
# Parameter preparation (done once at init; all arrays are tiny)
# ---------------------------------------------------------------------------
def _conv_toeplitz(w, b, n_q):
    """Lane-dense, pool-ready Toeplitz weights for one valid conv layer.

    w: (kh, kw, cin, cout) f32;  b: (cout,) f32;  n_q: number of output
    W-positions emitted (trailing positions the floor-mode 2x2 pool never
    reads are dropped).

    Input activation rows are laid out as column = w_pos * cin + c (zero
    padded to LANE lanes).  Output column for W-position q and channel n is
        (q % 2) * HALF + (q // 2) * cout + n
    so the W half of the 2x2 max pool is max(out[:, :HALF], out[:, HALF:])
    and the pooled result is already in the w_pos*cout + n layout the next
    layer expects.
    """
    kh, kw, cin, cout = w.shape
    q = jnp.arange(n_q, dtype=jnp.int32)
    colbase = (q % 2) * HALF + (q // 2) * cout
    shape = (n_q, kw, cin, cout)
    rows = jnp.broadcast_to(
        (q[:, None, None, None] + jnp.arange(kw)[None, :, None, None]) * cin
        + jnp.arange(cin)[None, None, :, None], shape).ravel()
    cols = jnp.broadcast_to(
        colbase[:, None, None, None] + jnp.arange(cout)[None, None, None, :],
        shape).ravel()
    toep = jnp.stack([
        jnp.zeros((LANE, 2 * HALF), jnp.float32).at[rows, cols].set(
            jnp.broadcast_to(w[i][None], shape).ravel())
        for i in range(kh)])
    bias = jnp.zeros((2 * HALF,), jnp.float32).at[
        (colbase[:, None] + jnp.arange(cout)[None, :]).ravel()].set(
        jnp.broadcast_to(b[None, :], (n_q, cout)).ravel())
    return toep.astype(jnp.bfloat16), bias.reshape(1, 2 * HALF)


def _pad_fc(w, b):
    """(in, out) FC weight/bias zero-padded to (LANE, LANE) / (1, LANE)."""
    wp = jnp.zeros((LANE, LANE), jnp.float32).at[:w.shape[0], :w.shape[1]].set(w)
    bp = jnp.zeros((1, LANE), jnp.float32).at[0, :b.shape[0]].set(b)
    return wp.astype(jnp.bfloat16), bp


def init_params(key):
    """Deterministic synthetic parameters (shapes from Net.__init__)."""
    ks = jax.random.split(key, 10)
    scale = 0.05
    w = lambda k, shape: scale * jax.random.normal(k, shape, dtype=jnp.float32)

    w1, b1 = w(ks[0], (3, 3, CHANNELS, 6)), w(ks[1], (6,))
    w2, b2 = w(ks[2], (5, 5, 6, 16)), w(ks[3], (16,))
    wf1, bf1 = w(ks[4], (16 * 5 * 5, 120)), w(ks[5], (120,))
    wf2, bf2 = w(ks[6], (120, 84)), w(ks[7], (84,))
    wf3, bf3 = w(ks[8], (84, NUM_CLASSES)), w(ks[9], (NUM_CLASSES,))

    # conv1: all 30 output W-positions used; conv2: 11 outputs but position 10
    # is never read by the floor-mode 2x2 pool, so only q=0..9 are emitted.
    w1t, b1t = _conv_toeplitz(w1, b1, n_q=30)
    w2t, b2t = _conv_toeplitz(w2, b2, n_q=10)

    # fc1: reorder input features from PyTorch's (c, h, w) flatten order to the
    # kernel's (h, w, c) layout and split into one (LANE, LANE) block per h.
    wf1_hwc = jnp.transpose(wf1.reshape(16, 5, 5, 120), (1, 2, 0, 3))
    wf1_hwc = wf1_hwc.reshape(5, 80, 120)
    wf1_blk = jnp.zeros((5, LANE, LANE), jnp.float32).at[:, :80, :120].set(
        wf1_hwc).astype(jnp.bfloat16)
    bf1_pad = jnp.zeros((1, LANE), jnp.float32).at[0, :120].set(bf1)

    wf2_pad, bf2_pad = _pad_fc(wf2, bf2)
    wf3_pad, bf3_pad = _pad_fc(wf3, bf3)

    return {
        "w1t": w1t, "b1t": b1t, "w2t": w2t, "b2t": b2t,
        "wf1": wf1_blk, "bf1": bf1_pad,
        "wf2": wf2_pad, "bf2": bf2_pad,
        "wf3": wf3_pad, "bf3": bf3_pad,
    }


# ---------------------------------------------------------------------------
# Forward pass (mirrors Net.forward) -- a single pallas_call
# ---------------------------------------------------------------------------
def net_forward(x, params):
    # Mirrors x.view(-1, CHANNELS, WIDTH, HEIGHT)  (WIDTH == HEIGHT == 32).
    x = x.reshape(-1, CHANNELS, HEIGHT, WIDTH)
    B = x.shape[0]
    # NCHW -> (B, H, W*C) with the lane axis zero-padded 96 -> 128 (layout
    # plumbing only; 32 KiB total).
    x = jnp.transpose(x, (0, 2, 3, 1)).reshape(B, HEIGHT, WIDTH * CHANNELS)
    x = jnp.pad(x, ((0, 0), (0, 0), (0, LANE - WIDTH * CHANNELS)))

    full = lambda *shape: pl.BlockSpec(shape, lambda b, s=len(shape): (0,) * s)

    out = pl.pallas_call(
        _net_kernel,
        out_shape=jax.ShapeDtypeStruct((B, 1, LANE), jnp.float32),
        grid_spec=pltpu.PrefetchScalarGridSpec(
            num_scalar_prefetch=0,
            grid=(B,),
            in_specs=[
                pl.BlockSpec((1, HEIGHT, LANE), lambda b: (b, 0, 0)),   # image
                full(3, LANE, 2 * HALF), full(1, 2 * HALF),             # conv1
                full(5, LANE, 2 * HALF), full(1, 2 * HALF),             # conv2
                full(5, LANE, LANE), full(1, LANE),                     # fc1
                full(LANE, LANE), full(1, LANE),                        # fc2
                full(LANE, LANE), full(1, LANE),                        # fc3
            ],
            out_specs=pl.BlockSpec((1, 1, LANE), lambda b: (b, 0, 0)),
        ),
        compiler_params=pltpu.CompilerParams(
            dimension_semantics=("parallel",)),
    )(x, params["w1t"], params["b1t"], params["w2t"], params["b2t"],
      params["wf1"], params["bf1"], params["wf2"], params["bf2"],
      params["wf3"], params["bf3"])

    return out[:, 0, :NUM_CLASSES]


if __name__ == "__main__":
    key = jax.random.PRNGKey(0)
    k_x, k_p = jax.random.split(key)
    # Input in PyTorch NCHW convention: (batch=2, 3, 32, 32)
    x = jax.random.normal(k_x, (2, CHANNELS, HEIGHT, WIDTH), dtype=jnp.float32)
    params = init_params(k_p)

    out = jax.block_until_ready(jax.jit(net_forward)(x, params))

    assert out.shape == (2, NUM_CLASSES), out.shape
    assert out.dtype == jnp.float32
    assert bool(jnp.all(jnp.isfinite(out)))
    print("KERNEL_OK")
</pallas_src>

<mosaic_0001>
module attributes {stable_mosaic.version = 11 : i64} {
  func.func @_net_kernel(%arg0: i32, %arg1: memref<1x32x128xf32, #tpu.memory_space<vmem>>, %arg2: memref<3x128x256xbf16, #tpu.memory_space<vmem>>, %arg3: memref<1x256xf32, #tpu.memory_space<vmem>>, %arg4: memref<5x128x256xbf16, #tpu.memory_space<vmem>>, %arg5: memref<1x256xf32, #tpu.memory_space<vmem>>, %arg6: memref<5x128x128xbf16, #tpu.memory_space<vmem>>, %arg7: memref<1x128xf32, #tpu.memory_space<vmem>>, %arg8: memref<128x128xbf16, #tpu.memory_space<vmem>>, %arg9: memref<1x128xf32, #tpu.memory_space<vmem>>, %arg10: memref<128x128xbf16, #tpu.memory_space<vmem>>, %arg11: memref<1x128xf32, #tpu.memory_space<vmem>>, %arg12: memref<1x1x128xf32, #tpu.memory_space<vmem>>) attributes {dimension_semantics = [#tpu.dimension_semantics<parallel>], iteration_bounds = array<i64: 2>, scalar_prefetch = 0 : i64, scratch_operands = 0 : i64, tpu.core_type = #tpu.core_type<tc>, window_params = [{transform_indices = @transform_0, window_bounds = array<i64: 1, 32, 128>}, {pipeline_mode = #tpu.pipeline_mode<synchronous>, transform_indices = @transform_1, window_bounds = array<i64: 3, 128, 256>}, {pipeline_mode = #tpu.pipeline_mode<synchronous>, transform_indices = @transform_2, window_bounds = array<i64: 1, 256>}, {pipeline_mode = #tpu.pipeline_mode<synchronous>, transform_indices = @transform_3, window_bounds = array<i64: 5, 128, 256>}, {pipeline_mode = #tpu.pipeline_mode<synchronous>, transform_indices = @transform_4, window_bounds = array<i64: 1, 256>}, {pipeline_mode = #tpu.pipeline_mode<synchronous>, transform_indices = @transform_5, window_bounds = array<i64: 5, 128, 128>}, {pipeline_mode = #tpu.pipeline_mode<synchronous>, transform_indices = @transform_6, window_bounds = array<i64: 1, 128>}, {pipeline_mode = #tpu.pipeline_mode<synchronous>, transform_indices = @transform_7, window_bounds = array<i64: 128, 128>}, {pipeline_mode = #tpu.pipeline_mode<synchronous>, transform_indices = @transform_8, window_bounds = array<i64: 1, 128>}, {pipeline_mode = #tpu.pipeline_mode<synchronous>, transform_indices = @transform_9, window_bounds = array<i64: 128, 128>}, {pipeline_mode = #tpu.pipeline_mode<synchronous>, transform_indices = @transform_10, window_bounds = array<i64: 1, 128>}, {transform_indices = @transform_11, window_bounds = array<i64: 1, 1, 128>}]} {
    %c0 = arith.constant 0 : index
    %c0_0 = arith.constant 0 : index
    %c0_1 = arith.constant 0 : index
    %0 = vector.load %arg1[%c0, %c0_0, %c0_1] : memref<1x32x128xf32, #tpu.memory_space<vmem>>, vector<1x32x128xf32>
    %1 = vector.shape_cast %0 : vector<1x32x128xf32> to vector<32x128xf32>
    %2 = arith.truncf %1 : vector<32x128xf32> to vector<32x128xbf16>
    %3 = vector.extract_strided_slice %2 {offsets = [0, 0], sizes = [30, 128], strides = [1, 1]} : vector<32x128xbf16> to vector<30x128xbf16>
    %c0_2 = arith.constant 0 : index
    %c0_3 = arith.constant 0 : index
    %c0_4 = arith.constant 0 : index
    %4 = vector.load %arg2[%c0_2, %c0_3, %c0_4] : memref<3x128x256xbf16, #tpu.memory_space<vmem>>, vector<1x128x256xbf16>
    %5 = vector.shape_cast %4 : vector<1x128x256xbf16> to vector<128x256xbf16>
    %cst = arith.constant dense<0.000000e+00> : vector<30x256xf32>
    %6 = tpu.matmul %3, %5, %cst {dimension_numbers = #tpu.dot_dimension_numbers<[1], [0], [0], [1], [0, 0, 1, 1], [], []>} : vector<30x128xbf16>, vector<128x256xbf16>, vector<30x256xf32> -> vector<30x256xf32>
    %7 = vector.extract_strided_slice %2 {offsets = [1, 0], sizes = [30, 128], strides = [1, 1]} : vector<32x128xbf16> to vector<30x128xbf16>
    %c1 = arith.constant 1 : index
    %c0_5 = arith.constant 0 : index
    %c0_6 = arith.constant 0 : index
    %8 = vector.load %arg2[%c1, %c0_5, %c0_6] : memref<3x128x256xbf16, #tpu.memory_space<vmem>>, vector<1x128x256xbf16>
    %9 = vector.shape_cast %8 : vector<1x128x256xbf16> to vector<128x256xbf16>
    %cst_7 = arith.constant dense<0.000000e+00> : vector<30x256xf32>
    %10 = tpu.matmul %7, %9, %cst_7 {dimension_numbers = #tpu.dot_dimension_numbers<[1], [0], [0], [1], [0, 0, 1, 1], [], []>} : vector<30x128xbf16>, vector<128x256xbf16>, vector<30x256xf32> -> vector<30x256xf32>
    %11 = arith.addf %6, %10 : vector<30x256xf32>
    %12 = vector.extract_strided_slice %2 {offsets = [2, 0], sizes = [30, 128], strides = [1, 1]} : vector<32x128xbf16> to vector<30x128xbf16>
    %c2 = arith.constant 2 : index
    %c0_8 = arith.constant 0 : index
    %c0_9 = arith.constant 0 : index
    %13 = vector.load %arg2[%c2, %c0_8, %c0_9] : memref<3x128x256xbf16, #tpu.memory_space<vmem>>, vector<1x128x256xbf16>
    %14 = vector.shape_cast %13 : vector<1x128x256xbf16> to vector<128x256xbf16>
    %cst_10 = arith.constant dense<0.000000e+00> : vector<30x256xf32>
    %15 = tpu.matmul %12, %14, %cst_10 {dimension_numbers = #tpu.dot_dimension_numbers<[1], [0], [0], [1], [0, 0, 1, 1], [], []>} : vector<30x128xbf16>, vector<128x256xbf16>, vector<30x256xf32> -> vector<30x256xf32>
    %16 = arith.addf %11, %15 : vector<30x256xf32>
    %c0_11 = arith.constant 0 : index
    %c0_12 = arith.constant 0 : index
    %17 = vector.load %arg3[%c0_11, %c0_12] : memref<1x256xf32, #tpu.memory_space<vmem>>, vector<1x256xf32>
    %18 = vector.broadcast %17 : vector<1x256xf32> to vector<30x256xf32>
    %19 = arith.addf %16, %18 : vector<30x256xf32>
    %cst_13 = arith.constant 0.000000e+00 : f32
    %20 = vector.broadcast %cst_13 : f32 to vector<30x256xf32>
    %21 = arith.maximumf %19, %20 : vector<30x256xf32>
    %22 = vector.extract_strided_slice %21 {offsets = [0, 0], sizes = [30, 128], strides = [1, 1]} : vector<30x256xf32> to vector<30x128xf32>
    %23 = vector.extract_strided_slice %21 {offsets = [0, 128], sizes = [30, 128], strides = [1, 1]} : vector<30x256xf32> to vector<30x128xf32>
    %24 = arith.maximumf %22, %23 : vector<30x128xf32>
    %25 = arith.truncf %24 : vector<30x128xf32> to vector<30x128xbf16>
    %26 = tpu.iota {dimensions = array<i32: 0>} : vector<15x30xi32>
    %27 = tpu.iota {dimensions = array<i32: 1>} : vector<15x30xi32>
    %c2_i32 = arith.constant 2 : i32
    %28 = vector.broadcast %c2_i32 : i32 to vector<15x30xi32>
    %29 = arith.muli %28, %26 : vector<15x30xi32>
    %c0_i32 = arith.constant 0 : i32
    %30 = vector.broadcast %c0_i32 : i32 to vector<15x30xi32>
    %31 = arith.addi %29, %30 : vector<15x30xi32>
    %32 = arith.cmpi eq, %27, %31 : vector<15x30xi32>
    %33 = arith.extui %32 : vector<15x30xi1> to vector<15x30xi32>
    %34 = arith.sitofp %33 : vector<15x30xi32> to vector<15x30xf32>
    %35 = arith.truncf %34 : vector<15x30xf32> to vector<15x30xbf16>
    %cst_14 = arith.constant dense<0.000000e+00> : vector<15x128xf32>
    %36 = tpu.matmul %35, %25, %cst_14 {dimension_numbers = #tpu.dot_dimension_numbers<[1], [0], [0], [1], [0, 0, 1, 1], [], []>} : vector<15x30xbf16>, vector<30x128xbf16>, vector<15x128xf32> -> vector<15x128xf32>
    %37 = tpu.iota {dimensions = array<i32: 0>} : vector<15x30xi32>
    %38 = tpu.iota {dimensions = array<i32: 1>} : vector<15x30xi32>
    %c2_i32_15 = arith.constant 2 : i32
    %39 = vector.broadcast %c2_i32_15 : i32 to vector<15x30xi32>
    %40 = arith.muli %39, %37 : vector<15x30xi32>
    %c1_i32 = arith.constant 1 : i32
    %41 = vector.broadcast %c1_i32 : i32 to vector<15x30xi32>
    %42 = arith.addi %40, %41 : vector<15x30xi32>
    %43 = arith.cmpi eq, %38, %42 : vector<15x30xi32>
    %44 = arith.extui %43 : vector<15x30xi1> to vector<15x30xi32>
    %45 = arith.sitofp %44 : vector<15x30xi32> to vector<15x30xf32>
    %46 = arith.truncf %45 : vector<15x30xf32> to vector<15x30xbf16>
    %cst_16 = arith.constant dense<0.000000e+00> : vector<15x128xf32>
    %47 = tpu.matmul %46, %25, %cst_16 {dimension_numbers = #tpu.dot_dimension_numbers<[1], [0], [0], [1], [0, 0, 1, 1], [], []>} : vector<15x30xbf16>, vector<30x128xbf16>, vector<15x128xf32> -> vector<15x128xf32>
    %48 = arith.maximumf %36, %47 : vector<15x128xf32>
    %49 = arith.truncf %48 : vector<15x128xf32> to vector<15x128xbf16>
    %50 = vector.extract_strided_slice %49 {offsets = [0, 0], sizes = [11, 128], strides = [1, 1]} : vector<15x128xbf16> to vector<11x128xbf16>
    %c0_17 = arith.constant 0 : index
    %c0_18 = arith.constant 0 : index
    %c0_19 = arith.constant 0 : index
    %51 = vector.load %arg4[%c0_17, %c0_18, %c0_19] : memref<5x128x256xbf16, #tpu.memory_space<vmem>>, vector<1x128x256xbf16>
    %52 = vector.shape_cast %51 : vector<1x128x256xbf16> to vector<128x256xbf16>
    %cst_20 = arith.constant dense<0.000000e+00> : vector<11x256xf32>
    %53 = tpu.matmul %50, %52, %cst_20 {dimension_numbers = #tpu.dot_dimension_numbers<[1], [0], [0], [1], [0, 0, 1, 1], [], []>} : vector<11x128xbf16>, vector<128x256xbf16>, vector<11x256xf32> -> vector<11x256xf32>
    %54 = vector.extract_strided_slice %49 {offsets = [1, 0], sizes = [11, 128], strides = [1, 1]} : vector<15x128xbf16> to vector<11x128xbf16>
    %c1_21 = arith.constant 1 : index
    %c0_22 = arith.constant 0 : index
    %c0_23 = arith.constant 0 : index
    %55 = vector.load %arg4[%c1_21, %c0_22, %c0_23] : memref<5x128x256xbf16, #tpu.memory_space<vmem>>, vector<1x128x256xbf16>
    %56 = vector.shape_cast %55 : vector<1x128x256xbf16> to vector<128x256xbf16>
    %cst_24 = arith.constant dense<0.000000e+00> : vector<11x256xf32>
    %57 = tpu.matmul %54, %56, %cst_24 {dimension_numbers = #tpu.dot_dimension_numbers<[1], [0], [0], [1], [0, 0, 1, 1], [], []>} : vector<11x128xbf16>, vector<128x256xbf16>, vector<11x256xf32> -> vector<11x256xf32>
    %58 = arith.addf %53, %57 : vector<11x256xf32>
    %59 = vector.extract_strided_slice %49 {offsets = [2, 0], sizes = [11, 128], strides = [1, 1]} : vector<15x128xbf16> to vector<11x128xbf16>
    %c2_25 = arith.constant 2 : index
    %c0_26 = arith.constant 0 : index
    %c0_27 = arith.constant 0 : index
    %60 = vector.load %arg4[%c2_25, %c0_26, %c0_27] : memref<5x128x256xbf16, #tpu.memory_space<vmem>>, vector<1x128x256xbf16>
    %61 = vector.shape_cast %60 : vector<1x128x256xbf16> to vector<128x256xbf16>
    %cst_28 = arith.constant dense<0.000000e+00> : vector<11x256xf32>
    %62 = tpu.matmul %59, %61, %cst_28 {dimension_numbers = #tpu.dot_dimension_numbers<[1], [0], [0], [1], [0, 0, 1, 1], [], []>} : vector<11x128xbf16>, vector<128x256xbf16>, vector<11x256xf32> -> vector<11x256xf32>
    %63 = arith.addf %58, %62 : vector<11x256xf32>
    %64 = vector.extract_strided_slice %49 {offsets = [3, 0], sizes = [11, 128], strides = [1, 1]} : vector<15x128xbf16> to vector<11x128xbf16>
    %c3 = arith.constant 3 : index
    %c0_29 = arith.constant 0 : index
    %c0_30 = arith.constant 0 : index
    %65 = vector.load %arg4[%c3, %c0_29, %c0_30] : memref<5x128x256xbf16, #tpu.memory_space<vmem>>, vector<1x128x256xbf16>
    %66 = vector.shape_cast %65 : vector<1x128x256xbf16> to vector<128x256xbf16>
    %cst_31 = arith.constant dense<0.000000e+00> : vector<11x256xf32>
    %67 = tpu.matmul %64, %66, %cst_31 {dimension_numbers = #tpu.dot_dimension_numbers<[1], [0], [0], [1], [0, 0, 1, 1], [], []>} : vector<11x128xbf16>, vector<128x256xbf16>, vector<11x256xf32> -> vector<11x256xf32>
    %68 = arith.addf %63, %67 : vector<11x256xf32>
    %69 = vector.extract_strided_slice %49 {offsets = [4, 0], sizes = [11, 128], strides = [1, 1]} : vector<15x128xbf16> to vector<11x128xbf16>
    %c4 = arith.constant 4 : index
    %c0_32 = arith.constant 0 : index
    %c0_33 = arith.constant 0 : index
    %70 = vector.load %arg4[%c4, %c0_32, %c0_33] : memref<5x128x256xbf16, #tpu.memory_space<vmem>>, vector<1x128x256xbf16>
    %71 = vector.shape_cast %70 : vector<1x128x256xbf16> to vector<128x256xbf16>
    %cst_34 = arith.constant dense<0.000000e+00> : vector<11x256xf32>
    %72 = tpu.matmul %69, %71, %cst_34 {dimension_numbers = #tpu.dot_dimension_numbers<[1], [0], [0], [1], [0, 0, 1, 1], [], []>} : vector<11x128xbf16>, vector<128x256xbf16>, vector<11x256xf32> -> vector<11x256xf32>
    %73 = arith.addf %68, %72 : vector<11x256xf32>
    %c0_35 = arith.constant 0 : index
    %c0_36 = arith.constant 0 : index
    %74 = vector.load %arg5[%c0_35, %c0_36] : memref<1x256xf32, #tpu.memory_space<vmem>>, vector<1x256xf32>
    %75 = vector.broadcast %74 : vector<1x256xf32> to vector<11x256xf32>
    %76 = arith.addf %73, %75 : vector<11x256xf32>
    %cst_37 = arith.constant 0.000000e+00 : f32
    %77 = vector.broadcast %cst_37 : f32 to vector<11x256xf32>
    %78 = arith.maximumf %76, %77 : vector<11x256xf32>
    %79 = vector.extract_strided_slice %78 {offsets = [0, 0], sizes = [11, 128], strides = [1, 1]} : vector<11x256xf32> to vector<11x128xf32>
    %80 = vector.extract_strided_slice %78 {offsets = [0, 128], sizes = [11, 128], strides = [1, 1]} : vector<11x256xf32> to vector<11x128xf32>
    %81 = arith.maximumf %79, %80 : vector<11x128xf32>
    %82 = arith.truncf %81 : vector<11x128xf32> to vector<11x128xbf16>
    %83 = tpu.iota {dimensions = array<i32: 0>} : vector<5x11xi32>
    %84 = tpu.iota {dimensions = array<i32: 1>} : vector<5x11xi32>
    %c2_i32_38 = arith.constant 2 : i32
    %85 = vector.broadcast %c2_i32_38 : i32 to vector<5x11xi32>
    %86 = arith.muli %85, %83 : vector<5x11xi32>
    %c0_i32_39 = arith.constant 0 : i32
    %87 = vector.broadcast %c0_i32_39 : i32 to vector<5x11xi32>
    %88 = arith.addi %86, %87 : vector<5x11xi32>
    %89 = arith.cmpi eq, %84, %88 : vector<5x11xi32>
    %90 = arith.extui %89 : vector<5x11xi1> to vector<5x11xi32>
    %91 = arith.sitofp %90 : vector<5x11xi32> to vector<5x11xf32>
    %92 = arith.truncf %91 : vector<5x11xf32> to vector<5x11xbf16>
    %cst_40 = arith.constant dense<0.000000e+00> : vector<5x128xf32>
    %93 = tpu.matmul %92, %82, %cst_40 {dimension_numbers = #tpu.dot_dimension_numbers<[1], [0], [0], [1], [0, 0, 1, 1], [], []>} : vector<5x11xbf16>, vector<11x128xbf16>, vector<5x128xf32> -> vector<5x128xf32>
    %94 = tpu.iota {dimensions = array<i32: 0>} : vector<5x11xi32>
    %95 = tpu.iota {dimensions = array<i32: 1>} : vector<5x11xi32>
    %c2_i32_41 = arith.constant 2 : i32
    %96 = vector.broadcast %c2_i32_41 : i32 to vector<5x11xi32>
    %97 = arith.muli %96, %94 : vector<5x11xi32>
    %c1_i32_42 = arith.constant 1 : i32
    %98 = vector.broadcast %c1_i32_42 : i32 to vector<5x11xi32>
    %99 = arith.addi %97, %98 : vector<5x11xi32>
    %100 = arith.cmpi eq, %95, %99 : vector<5x11xi32>
    %101 = arith.extui %100 : vector<5x11xi1> to vector<5x11xi32>
    %102 = arith.sitofp %101 : vector<5x11xi32> to vector<5x11xf32>
    %103 = arith.truncf %102 : vector<5x11xf32> to vector<5x11xbf16>
    %cst_43 = arith.constant dense<0.000000e+00> : vector<5x128xf32>
    %104 = tpu.matmul %103, %82, %cst_43 {dimension_numbers = #tpu.dot_dimension_numbers<[1], [0], [0], [1], [0, 0, 1, 1], [], []>} : vector<5x11xbf16>, vector<11x128xbf16>, vector<5x128xf32> -> vector<5x128xf32>
    %105 = arith.maximumf %93, %104 : vector<5x128xf32>
    %106 = arith.truncf %105 : vector<5x128xf32> to vector<5x128xbf16>
    %107 = vector.extract_strided_slice %106 {offsets = [0, 0], sizes = [1, 128], strides = [1, 1]} : vector<5x128xbf16> to vector<1x128xbf16>
    %c0_44 = arith.constant 0 : index
    %c0_45 = arith.constant 0 : index
    %c0_46 = arith.constant 0 : index
    %108 = vector.load %arg6[%c0_44, %c0_45, %c0_46] : memref<5x128x128xbf16, #tpu.memory_space<vmem>>, vector<1x128x128xbf16>
    %109 = vector.shape_cast %108 : vector<1x128x128xbf16> to vector<128x128xbf16>
    %cst_47 = arith.constant dense<0.000000e+00> : vector<1x128xf32>
    %110 = tpu.matmul %107, %109, %cst_47 {dimension_numbers = #tpu.dot_dimension_numbers<[1], [0], [0], [1], [0, 0, 1, 1], [], []>} : vector<1x128xbf16>, vector<128x128xbf16>, vector<1x128xf32> -> vector<1x128xf32>
    %111 = vector.extract_strided_slice %106 {offsets = [1, 0], sizes = [1, 128], strides = [1, 1]} : vector<5x128xbf16> to vector<1x128xbf16>
    %c1_48 = arith.constant 1 : index
    %c0_49 = arith.constant 0 : index
    %c0_50 = arith.constant 0 : index
    %112 = vector.load %arg6[%c1_48, %c0_49, %c0_50] : memref<5x128x128xbf16, #tpu.memory_space<vmem>>, vector<1x128x128xbf16>
    %113 = vector.shape_cast %112 : vector<1x128x128xbf16> to vector<128x128xbf16>
    %cst_51 = arith.constant dense<0.000000e+00> : vector<1x128xf32>
    %114 = tpu.matmul %111, %113, %cst_51 {dimension_numbers = #tpu.dot_dimension_numbers<[1], [0], [0], [1], [0, 0, 1, 1], [], []>} : vector<1x128xbf16>, vector<128x128xbf16>, vector<1x128xf32> -> vector<1x128xf32>
    %115 = arith.addf %110, %114 : vector<1x128xf32>
    %116 = vector.extract_strided_slice %106 {offsets = [2, 0], sizes = [1, 128], strides = [1, 1]} : vector<5x128xbf16> to vector<1x128xbf16>
    %c2_52 = arith.constant 2 : index
    %c0_53 = arith.constant 0 : index
    %c0_54 = arith.constant 0 : index
    %117 = vector.load %arg6[%c2_52, %c0_53, %c0_54] : memref<5x128x128xbf16, #tpu.memory_space<vmem>>, vector<1x128x128xbf16>
    %118 = vector.shape_cast %117 : vector<1x128x128xbf16> to vector<128x128xbf16>
    %cst_55 = arith.constant dense<0.000000e+00> : vector<1x128xf32>
    %119 = tpu.matmul %116, %118, %cst_55 {dimension_numbers = #tpu.dot_dimension_numbers<[1], [0], [0], [1], [0, 0, 1, 1], [], []>} : vector<1x128xbf16>, vector<128x128xbf16>, vector<1x128xf32> -> vector<1x128xf32>
    %120 = arith.addf %115, %119 : vector<1x128xf32>
    %121 = vector.extract_strided_slice %106 {offsets = [3, 0], sizes = [1, 128], strides = [1, 1]} : vector<5x128xbf16> to vector<1x128xbf16>
    %c3_56 = arith.constant 3 : index
    %c0_57 = arith.constant 0 : index
    %c0_58 = arith.constant 0 : index
    %122 = vector.load %arg6[%c3_56, %c0_57, %c0_58] : memref<5x128x128xbf16, #tpu.memory_space<vmem>>, vector<1x128x128xbf16>
    %123 = vector.shape_cast %122 : vector<1x128x128xbf16> to vector<128x128xbf16>
    %cst_59 = arith.constant dense<0.000000e+00> : vector<1x128xf32>
    %124 = tpu.matmul %121, %123, %cst_59 {dimension_numbers = #tpu.dot_dimension_numbers<[1], [0], [0], [1], [0, 0, 1, 1], [], []>} : vector<1x128xbf16>, vector<128x128xbf16>, vector<1x128xf32> -> vector<1x128xf32>
    %125 = arith.addf %120, %124 : vector<1x128xf32>
    %126 = vector.extract_strided_slice %106 {offsets = [4, 0], sizes = [1, 128], strides = [1, 1]} : vector<5x128xbf16> to vector<1x128xbf16>
    %c4_60 = arith.constant 4 : index
    %c0_61 = arith.constant 0 : index
    %c0_62 = arith.constant 0 : index
    %127 = vector.load %arg6[%c4_60, %c0_61, %c0_62] : memref<5x128x128xbf16, #tpu.memory_space<vmem>>, vector<1x128x128xbf16>
    %128 = vector.shape_cast %127 : vector<1x128x128xbf16> to vector<128x128xbf16>
    %cst_63 = arith.constant dense<0.000000e+00> : vector<1x128xf32>
    %129 = tpu.matmul %126, %128, %cst_63 {dimension_numbers = #tpu.dot_dimension_numbers<[1], [0], [0], [1], [0, 0, 1, 1], [], []>} : vector<1x128xbf16>, vector<128x128xbf16>, vector<1x128xf32> -> vector<1x128xf32>
    %130 = arith.addf %125, %129 : vector<1x128xf32>
    %c0_64 = arith.constant 0 : index
    %c0_65 = arith.constant 0 : index
    %131 = vector.load %arg7[%c0_64, %c0_65] : memref<1x128xf32, #tpu.memory_space<vmem>>, vector<1x128xf32>
    %132 = arith.addf %130, %131 : vector<1x128xf32>
    %cst_66 = arith.constant 0.000000e+00 : f32
    %133 = vector.broadcast %cst_66 : f32 to vector<1x128xf32>
    %134 = arith.maximumf %132, %133 : vector<1x128xf32>
    %135 = arith.truncf %134 : vector<1x128xf32> to vector<1x128xbf16>
    %c0_67 = arith.constant 0 : index
    %c0_68 = arith.constant 0 : index
    %136 = vector.load %arg8[%c0_67, %c0_68] : memref<128x128xbf16, #tpu.memory_space<vmem>>, vector<128x128xbf16>
    %cst_69 = arith.constant dense<0.000000e+00> : vector<1x128xf32>
    %137 = tpu.matmul %135, %136, %cst_69 {dimension_numbers = #tpu.dot_dimension_numbers<[1], [0], [0], [1], [0, 0, 1, 1], [], []>} : vector<1x128xbf16>, vector<128x128xbf16>, vector<1x128xf32> -> vector<1x128xf32>
    %c0_70 = arith.constant 0 : index
    %c0_71 = arith.constant 0 : index
    %138 = vector.load %arg9[%c0_70, %c0_71] : memref<1x128xf32, #tpu.memory_space<vmem>>, vector<1x128xf32>
    %139 = arith.addf %137, %138 : vector<1x128xf32>
    %cst_72 = arith.constant 0.000000e+00 : f32
    %140 = vector.broadcast %cst_72 : f32 to vector<1x128xf32>
    %141 = arith.maximumf %139, %140 : vector<1x128xf32>
    %142 = arith.truncf %141 : vector<1x128xf32> to vector<1x128xbf16>
    %c0_73 = arith.constant 0 : index
    %c0_74 = arith.constant 0 : index
    %143 = vector.load %arg10[%c0_73, %c0_74] : memref<128x128xbf16, #tpu.memory_space<vmem>>, vector<128x128xbf16>
    %cst_75 = arith.constant dense<0.000000e+00> : vector<1x128xf32>
    %144 = tpu.matmul %142, %143, %cst_75 {dimension_numbers = #tpu.dot_dimension_numbers<[1], [0], [0], [1], [0, 0, 1, 1], [], []>} : vector<1x128xbf16>, vector<128x128xbf16>, vector<1x128xf32> -> vector<1x128xf32>
    %c0_76 = arith.constant 0 : index
    %c0_77 = arith.constant 0 : index
    %145 = vector.load %arg11[%c0_76, %c0_77] : memref<1x128xf32, #tpu.memory_space<vmem>>, vector<1x128xf32>
    %146 = arith.addf %144, %145 : vector<1x128xf32>
    %c0_78 = arith.constant 0 : index
    %c0_79 = arith.constant 0 : index
    %c0_80 = arith.constant 0 : index
    %147 = vector.load %arg12[%c0_78, %c0_79, %c0_80] : memref<1x1x128xf32, #tpu.memory_space<vmem>>, vector<1x1x128xf32>
    %148 = vector.shape_cast %147 : vector<1x1x128xf32> to vector<1x128xf32>
    %149 = vector.shape_cast %146 : vector<1x128xf32> to vector<1x1x128xf32>
    tpu.vector_store %arg12[%c0_78, %c0_79, %c0_80], %149 {strides = array<i32>} : memref<1x1x128xf32, #tpu.memory_space<vmem>>, vector<1x1x128xf32>,
    return
  }
  func.func @transform_0(%arg0: i32) -> (i32, i32, i32) {
    %c0_i32 = arith.constant 0 : i32
    %c0_i32_0 = arith.constant 0 : i32
    %c0_i32_1 = arith.constant 0 : i32
    return %arg0, %c0_i32, %c0_i32_0 : i32, i32, i32
  }
  func.func @transform_1(%arg0: i32) -> (i32, i32, i32) {
    %c0_i32 = arith.constant 0 : i32
    %c0_i32_0 = arith.constant 0 : i32
    %c0_i32_1 = arith.constant 0 : i32
    %c0_i32_2 = arith.constant 0 : i32
    return %c0_i32, %c0_i32_0, %c0_i32_1 : i32, i32, i32
  }
  func.func @transform_2(%arg0: i32) -> (i32, i32) {
    %c0_i32 = arith.constant 0 : i32
    %c0_i32_0 = arith.constant 0 : i32
    %c0_i32_1 = arith.constant 0 : i32
    return %c0_i32, %c0_i32_0 : i32, i32
  }
  func.func @transform_3(%arg0: i32) -> (i32, i32, i32) {
    %c0_i32 = arith.constant 0 : i32
    %c0_i32_0 = arith.constant 0 : i32
    %c0_i32_1 = arith.constant 0 : i32
    %c0_i32_2 = arith.constant 0 : i32
    return %c0_i32, %c0_i32_0, %c0_i32_1 : i32, i32, i32
  }
  func.func @transform_4(%arg0: i32) -> (i32, i32) {
    %c0_i32 = arith.constant 0 : i32
    %c0_i32_0 = arith.constant 0 : i32
    %c0_i32_1 = arith.constant 0 : i32
    return %c0_i32, %c0_i32_0 : i32, i32
  }
  func.func @transform_5(%arg0: i32) -> (i32, i32, i32) {
    %c0_i32 = arith.constant 0 : i32
    %c0_i32_0 = arith.constant 0 : i32
    %c0_i32_1 = arith.constant 0 : i32
    %c0_i32_2 = arith.constant 0 : i32
    return %c0_i32, %c0_i32_0, %c0_i32_1 : i32, i32, i32
  }
  func.func @transform_6(%arg0: i32) -> (i32, i32) {
    %c0_i32 = arith.constant 0 : i32
    %c0_i32_0 = arith.constant 0 : i32
    %c0_i32_1 = arith.constant 0 : i32
    return %c0_i32, %c0_i32_0 : i32, i32
  }
  func.func @transform_7(%arg0: i32) -> (i32, i32) {
    %c0_i32 = arith.constant 0 : i32
    %c0_i32_0 = arith.constant 0 : i32
    %c0_i32_1 = arith.constant 0 : i32
    return %c0_i32, %c0_i32_0 : i32, i32
  }
  func.func @transform_8(%arg0: i32) -> (i32, i32) {
    %c0_i32 = arith.constant 0 : i32
    %c0_i32_0 = arith.constant 0 : i32
    %c0_i32_1 = arith.constant 0 : i32
    return %c0_i32, %c0_i32_0 : i32, i32
  }
  func.func @transform_9(%arg0: i32) -> (i32, i32) {
    %c0_i32 = arith.constant 0 : i32
    %c0_i32_0 = arith.constant 0 : i32
    %c0_i32_1 = arith.constant 0 : i32
    return %c0_i32, %c0_i32_0 : i32, i32
  }
  func.func @transform_10(%arg0: i32) -> (i32, i32) {
    %c0_i32 = arith.constant 0 : i32
    %c0_i32_0 = arith.constant 0 : i32
    %c0_i32_1 = arith.constant 0 : i32
    return %c0_i32, %c0_i32_0 : i32, i32
  }
  func.func @transform_11(%arg0: i32) -> (i32, i32, i32) {
    %c0_i32 = arith.constant 0 : i32
    %c0_i32_0 = arith.constant 0 : i32
    %c0_i32_1 = arith.constant 0 : i32
    return %arg0, %c0_i32, %c0_i32_0 : i32, i32, i32
  }
}

</mosaic_0001>

<llo_original>
// kernel: net_forward.1
$region0: #{net_forward.1}
  #allocation0 [shape = 'u32[]', space=smem, size = 0x4, offset = 0x4, fixed_abs, tag = 'smem constant byte address 0x4 - core index']
  #allocation1 [shape = 'u32[144,128]{1,0:T(1,128)}', space=vmem, size = 0x12000, scoped, tag = 'internal scratch']
  %s0 = inlined_call_operand.vmem [shape: f32[2,32,128], index: 0, kind: input, shape index: {}]
  %s1 = inlined_call_operand.hbm [shape: bf16[3,128,256], index: 1, kind: input, shape index: {}]
  %s2 = inlined_call_operand.vmem [shape: f32[1,256], index: 2, kind: input, shape index: {}]
  %s3 = inlined_call_operand.vmem [shape: bf16[5,128,256], index: 3, kind: input, shape index: {}]
  %s4 = inlined_call_operand.vmem [shape: f32[1,256], index: 4, kind: input, shape index: {}]
  %s5 = inlined_call_operand.hbm [shape: bf16[5,128,128], index: 5, kind: input, shape index: {}]
  %s6 = inlined_call_operand.vmem [shape: f32[1,128], index: 6, kind: input, shape index: {}]
  %s7 = inlined_call_operand.vmem [shape: bf16[128,128], index: 7, kind: input, shape index: {}]
  %s8 = inlined_call_operand.vmem [shape: f32[1,128], index: 8, kind: input, shape index: {}]
  %s9 = inlined_call_operand.vmem [shape: bf16[128,128], index: 9, kind: input, shape index: {}]
  %s10 = inlined_call_operand.vmem [shape: f32[1,128], index: 10, kind: input, shape index: {}]
  %s11 = inlined_call_operand.hbm [shape: f32[2,1,128], index: 11, kind: output, shape index: {}]
  %s12 = sld [smem:[#allocation0]]
  $region85: #{net_forward.1} parent=0
    _
  %s14 = ssub.s32 1, %s12
  %s15 = scalar_select 0, %s14, %s12
  $region1: #{net_forward.1} parent=0
    #allocation2 [shape = 'u8[196608]{0}', space=vmem, size = 0x30000, scoped, tag = 'input window, operand 1, single buffered']
    #allocation3 [shape = 's32[2]{0}', space=sflag, size = 0x8, scoped, tag = 'scoped memory for net_forward.1']
    #allocation4 [shape = 's32[2]{0}', space=sflag, size = 0x8, scoped, tag = 'scoped memory for net_forward.1']
    #allocation5 [shape = 'u8[163840]{0}', space=vmem, size = 0x28000, scoped, tag = 'input window, operand 5, single buffered']
    #allocation6 [shape = 's32[1]{0}', space=sflag, size = 0x4, scoped, tag = 'scoped memory for net_forward.1']
    #allocation7 [shape = 'u8[1024]{0}', space=vmem, size = 0x400, scoped, tag = 'output window, operand 0']
    %16 = vsyncpa [#allocation3], 0
    %17 = vsyncpa [#allocation6], 0
    %18 = vsyncpa [#allocation4], 0
    %s19 = scalar_lea.sflag [#allocation4], 1
    %20 = vsyncpa %s19, 0
    loop: start=0, step=1, limit=4
    $region2: #{net_forward.1} parent=1 // loop_pre_header
      _
    $region3: #{net_forward.1} parent=1 // loop_header
      %s22 = sphi 0, %s26
      %p23 = scmp.ge.s32.totalorder %s22, 4
      %s32 = sphi 0, %s34
      %s35 = sphi 0, %s32
      %s36 = sphi 0, %s35
      %s52 = sphi 0, %s36
      %s56 = sphi 0, %s56
      %s58 = sphi 0, %s56
      %s59 = sphi 0, %s58
      %s73 = sphi 0, %s59
      %s77 = sphi 0, %s77
      %s79 = sphi 0, %s77
      %s80 = sphi 0, %s79
      %s94 = sphi 0, %s80
      %s98 = sphi 0, %s98
      %s100 = sphi 0, %s98
      %s101 = sphi 0, %s100
      %s115 = sphi 0, %s101
      %s119 = sphi 0, %s119
      %s121 = sphi 0, %s119
      %s122 = sphi 0, %s121
      %s136 = sphi 0, %s122
      %s140 = sphi 0, %s140
      %s142 = sphi 0, %s140
      %s143 = sphi 0, %s142
      %s157 = sphi 0, %s143
      %s161 = sphi 0, %s161
      %s163 = sphi 0, %s161
      %s164 = sphi 0, %s163
      %s178 = sphi 0, %s164
      %s182 = sphi 0, %s182
      %s184 = sphi 0, %s182
      %s185 = sphi 0, %s184
      %s199 = sphi 0, %s185
      %s203 = sphi 0, %s203
      %s205 = sphi 0, %s203
      %s206 = sphi 0, %s205
      %s220 = sphi 0, %s206
      %s224 = sphi 0, %s224
      %s226 = sphi 0, %s224
      %s227 = sphi 0, %s226
      %s241 = sphi 0, %s227
      %s245 = sphi 0, %s245
      %s247 = sphi 0, %s245
      %s248 = sphi 0, %s247
      %s262 = sphi 0, %s248
      %s268 = sphi 0, %s270
      %s271 = sphi 0, %s268
      %s272 = sphi 0, %s271
      %s288 = sphi 0, %s272
    $region4: #{net_forward.1} parent=1 // loop_header_branch
      %25 = sbr.rel (%p23) target = $region8
    $region5: #{net_forward.1} parent=1 // loop_body
      %s27 = ssub.s32 %s22, 1
      %s28 = ssub.s32 %s22, 2
      %s29 = sadd.s32 %s22, 1
      %s30 = ssub.s32 %s22, %s29
      %p31 = scmp.eq.s32.totalorder %s30, 0
      %s33 = sadd.s32 %s32, 1
      %s34 = scalar_select %p31, %s32, %s33
      %p37 = pneg %p31
      %p38 = scmp.eq.s32.totalorder %s22, 1
      %p39 = por %p37, %p38
      %p40 = scmp.ne.s32.totalorder %s32, %s35
      %p41 = scmp.eq.s32.totalorder %s22, 0
      %p42 = por %p40, %p41
      %p43 = scmp.ne.s32.totalorder %s32, %s35
      %p44 = scmp.eq.s32.totalorder %s27, 1
      %p45 = por %p43, %p44
      %p46 = scmp.ne.s32.totalorder %s35, %s36
      %p47 = scmp.eq.s32.totalorder %s27, 0
      %p48 = por %p46, %p47
      %p49 = scmp.ne.s32.totalorder %s35, %s36
      %p50 = scmp.eq.s32.totalorder %s28, 1
      %p51 = por %p49, %p50
      %p53 = scmp.ne.s32.totalorder %s36, %s52
      %p54 = scmp.eq.s32.totalorder %s28, 0
      %p55 = por %p53, %p54
      %s57 = sadd.s32 %s56, 1
      %p60 = scmp.eq.s32.totalorder %s22, 1
      %p61 = scmp.ne.s32.totalorder %s56, %s58
      %p62 = scmp.eq.s32.totalorder %s22, 0
      %p63 = por %p61, %p62
      %p64 = scmp.ne.s32.totalorder %s56, %s58
      %p65 = scmp.eq.s32.totalorder %s27, 1
      %p66 = por %p64, %p65
      %p67 = scmp.ne.s32.totalorder %s58, %s59
      %p68 = scmp.eq.s32.totalorder %s27, 0
      %p69 = por %p67, %p68
      %p70 = scmp.ne.s32.totalorder %s58, %s59
      %p71 = scmp.eq.s32.totalorder %s28, 1
      %p72 = por %p70, %p71
      %p74 = scmp.ne.s32.totalorder %s59, %s73
      %p75 = scmp.eq.s32.totalorder %s28, 0
      %p76 = por %p74, %p75
      %s78 = sadd.s32 %s77, 1
      %p81 = scmp.eq.s32.totalorder %s22, 1
      %p82 = scmp.ne.s32.totalorder %s77, %s79
      %p83 = scmp.eq.s32.totalorder %s22, 0
      %p84 = por %p82, %p83
      %p85 = scmp.ne.s32.totalorder %s77, %s79
      %p86 = scmp.eq.s32.totalorder %s27, 1
      %p87 = por %p85, %p86
      %p88 = scmp.ne.s32.totalorder %s79, %s80
      %p89 = scmp.eq.s32.totalorder %s27, 0
      %p90 = por %p88, %p89
      %p91 = scmp.ne.s32.totalorder %s79, %s80
      %p92 = scmp.eq.s32.totalorder %s28, 1
      %p93 = por %p91, %p92
      %p95 = scmp.ne.s32.totalorder %s80, %s94
      %p96 = scmp.eq.s32.totalorder %s28, 0
      %p97 = por %p95, %p96
      %s99 = sadd.s32 %s98, 1
      %p102 = scmp.eq.s32.totalorder %s22, 1
      %p103 = scmp.ne.s32.totalorder %s98, %s100
      %p104 = scmp.eq.s32.totalorder %s22, 0
      %p105 = por %p103, %p104
      %p106 = scmp.ne.s32.totalorder %s98, %s100
      %p107 = scmp.eq.s32.totalorder %s27, 1
      %p108 = por %p106, %p107
      %p109 = scmp.ne.s32.totalorder %s100, %s101
      %p110 = scmp.eq.s32.totalorder %s27, 0
      %p111 = por %p109, %p110
      %p112 = scmp.ne.s32.totalorder %s100, %s101
      %p113 = scmp.eq.s32.totalorder %s28, 1
      %p114 = por %p112, %p113
      %p116 = scmp.ne.s32.totalorder %s101, %s115
      %p117 = scmp.eq.s32.totalorder %s28, 0
      %p118 = por %p116, %p117
      %s120 = sadd.s32 %s119, 1
      %p123 = scmp.eq.s32.totalorder %s22, 1
      %p124 = scmp.ne.s32.totalorder %s119, %s121
      %p125 = scmp.eq.s32.totalorder %s22, 0
      %p126 = por %p124, %p125
      %p127 = scmp.ne.s32.totalorder %s119, %s121
      %p128 = scmp.eq.s32.totalorder %s27, 1
      %p129 = por %p127, %p128
      %p130 = scmp.ne.s32.totalorder %s121, %s122
      %p131 = scmp.eq.s32.totalorder %s27, 0
      %p132 = por %p130, %p131
      %p133 = scmp.ne.s32.totalorder %s121, %s122
      %p134 = scmp.eq.s32.totalorder %s28, 1
      %p135 = por %p133, %p134
      %p137 = scmp.ne.s32.totalorder %s122, %s136
      %p138 = scmp.eq.s32.totalorder %s28, 0
      %p139 = por %p137, %p138
      %s141 = sadd.s32 %s140, 1
      %p144 = scmp.eq.s32.totalorder %s22, 1
      %p145 = scmp.ne.s32.totalorder %s140, %s142
      %p146 = scmp.eq.s32.totalorder %s22, 0
      %p147 = por %p145, %p146
      %p148 = scmp.ne.s32.totalorder %s140, %s142
      %p149 = scmp.eq.s32.totalorder %s27, 1
      %p150 = por %p148, %p149
      %p151 = scmp.ne.s32.totalorder %s142, %s143
      %p152 = scmp.eq.s32.totalorder %s27, 0
      %p153 = por %p151, %p152
      %p154 = scmp.ne.s32.totalorder %s142, %s143
      %p155 = scmp.eq.s32.totalorder %s28, 1
      %p156 = por %p154, %p155
      %p158 = scmp.ne.s32.totalorder %s143, %s157
      %p159 = scmp.eq.s32.totalorder %s28, 0
      %p160 = por %p158, %p159
      %s162 = sadd.s32 %s161, 1
      %p165 = scmp.eq.s32.totalorder %s22, 1
      %p166 = scmp.ne.s32.totalorder %s161, %s163
      %p167 = scmp.eq.s32.totalorder %s22, 0
      %p168 = por %p166, %p167
      %p169 = scmp.ne.s32.totalorder %s161, %s163
      %p170 = scmp.eq.s32.totalorder %s27, 1
      %p171 = por %p169, %p170
      %p172 = scmp.ne.s32.totalorder %s163, %s164
      %p173 = scmp.eq.s32.totalorder %s27, 0
      %p174 = por %p172, %p173
      %p175 = scmp.ne.s32.totalorder %s163, %s164
      %p176 = scmp.eq.s32.totalorder %s28, 1
      %p177 = por %p175, %p176
      %p179 = scmp.ne.s32.totalorder %s164, %s178
      %p180 = scmp.eq.s32.totalorder %s28, 0
      %p181 = por %p179, %p180
      %s183 = sadd.s32 %s182, 1
      %p186 = scmp.eq.s32.totalorder %s22, 1
      %p187 = scmp.ne.s32.totalorder %s182, %s184
      %p188 = scmp.eq.s32.totalorder %s22, 0
      %p189 = por %p187, %p188
      %p190 = scmp.ne.s32.totalorder %s182, %s184
      %p191 = scmp.eq.s32.totalorder %s27, 1
      %p192 = por %p190, %p191
      %p193 = scmp.ne.s32.totalorder %s184, %s185
      %p194 = scmp.eq.s32.totalorder %s27, 0
      %p195 = por %p193, %p194
      %p196 = scmp.ne.s32.totalorder %s184, %s185
      %p197 = scmp.eq.s32.totalorder %s28, 1
      %p198 = por %p196, %p197
      %p200 = scmp.ne.s32.totalorder %s185, %s199
      %p201 = scmp.eq.s32.totalorder %s28, 0
      %p202 = por %p200, %p201
      %s204 = sadd.s32 %s203, 1
      %p207 = scmp.eq.s32.totalorder %s22, 1
      %p208 = scmp.ne.s32.totalorder %s203, %s205
      %p209 = scmp.eq.s32.totalorder %s22, 0
      %p210 = por %p208, %p209
      %p211 = scmp.ne.s32.totalorder %s203, %s205
      %p212 = scmp.eq.s32.totalorder %s27, 1
      %p213 = por %p211, %p212
      %p214 = scmp.ne.s32.totalorder %s205, %s206
      %p215 = scmp.eq.s32.totalorder %s27, 0
      %p216 = por %p214, %p215
      %p217 = scmp.ne.s32.totalorder %s205, %s206
      %p218 = scmp.eq.s32.totalorder %s28, 1
      %p219 = por %p217, %p218
      %p221 = scmp.ne.s32.totalorder %s206, %s220
      %p222 = scmp.eq.s32.totalorder %s28, 0
      %p223 = por %p221, %p222
      %s225 = sadd.s32 %s224, 1
      %p228 = scmp.eq.s32.totalorder %s22, 1
      %p229 = scmp.ne.s32.totalorder %s224, %s226
      %p230 = scmp.eq.s32.totalorder %s22, 0
      %p231 = por %p229, %p230
      %p232 = scmp.ne.s32.totalorder %s224, %s226
      %p233 = scmp.eq.s32.totalorder %s27, 1
      %p234 = por %p232, %p233
      %p235 = scmp.ne.s32.totalorder %s226, %s227
      %p236 = scmp.eq.s32.totalorder %s27, 0
      %p237 = por %p235, %p236
      %p238 = scmp.ne.s32.totalorder %s226, %s227
      %p239 = scmp.eq.s32.totalorder %s28, 1
      %p240 = por %p238, %p239
      %p242 = scmp.ne.s32.totalorder %s227, %s241
      %p243 = scmp.eq.s32.totalorder %s28, 0
      %p244 = por %p242, %p243
      %s246 = sadd.s32 %s245, 1
      %p249 = scmp.eq.s32.totalorder %s22, 1
      %p250 = scmp.ne.s32.totalorder %s245, %s247
      %p251 = scmp.eq.s32.totalorder %s22, 0
      %p252 = por %p250, %p251
      %p253 = scmp.ne.s32.totalorder %s245, %s247
      %p254 = scmp.eq.s32.totalorder %s27, 1
      %p255 = por %p253, %p254
      %p256 = scmp.ne.s32.totalorder %s247, %s248
      %p257 = scmp.eq.s32.totalorder %s27, 0
      %p258 = por %p256, %p257
      %p259 = scmp.ne.s32.totalorder %s247, %s248
      %p260 = scmp.eq.s32.totalorder %s28, 1
      %p261 = por %p259, %p260
      %p263 = scmp.ne.s32.totalorder %s248, %s262
      %p264 = scmp.eq.s32.totalorder %s28, 0
      %p265 = por %p263, %p264
      %s266 = ssub.s32 %s22, %s29
      %p267 = scmp.eq.s32.totalorder %s266, 0
      %s269 = sadd.s32 %s268, 1
      %s270 = scalar_select %p267, %s268, %s269
      %p273 = pneg %p267
      %p274 = scmp.eq.s32.totalorder %s22, 1
      %p275 = por %p273, %p274
      %p276 = scmp.ne.s32.totalorder %s268, %s271
      %p277 = scmp.eq.s32.totalorder %s22, 0
      %p278 = por %p276, %p277
      %p279 = scmp.ne.s32.totalorder %s268, %s271
      %p280 = scmp.eq.s32.totalorder %s27, 1
      %p281 = por %p279, %p280
      %p282 = scmp.ne.s32.totalorder %s271, %s272
      %p283 = scmp.eq.s32.totalorder %s27, 0
      %p284 = por %p282, %p283
      %p285 = scmp.ne.s32.totalorder %s271, %s272
      %p286 = scmp.eq.s32.totalorder %s28, 1
      %p287 = por %p285, %p286
      %p289 = scmp.ne.s32.totalorder %s272, %s288
      %p290 = scmp.eq.s32.totalorder %s28, 0
      %p291 = por %p289, %p290
      %p292 = scmp.le.s32.totalorder 1, %s22
      %p293 = scmp.lt.s32.totalorder %s22, 3
      %p294 = pnand %p292, %p293
      %p295 = pneg %p294
      // Predicated region
      $region9: #{net_forward.1} parent=5 // pred_check
        _
      $region10: #{net_forward.1} parent=5 // pred_check_branch
        %297 = sbr.rel (%p294) target = $region12
      $region11: #{net_forward.1} parent=5 // pred_region
        %s298 = ssub.s32 %s22, 1
        // Predicated region
        $region13: #{net_forward.1} parent=11 // pred_check
          %p299 = pneg %p69
        $region14: #{net_forward.1} parent=11 // pred_check_branch
          %301 = sbr.rel (%p299) target = $region16
        $region15: #{net_forward.1} parent=11 // pred_region
          %s303 = ssub.s32 6144, 6144
          %304 = vsyncadd [#allocation3], %s303
          %s305 = sshll.u32 [#allocation2], 4
          %s306 = int_to_ptr.vmem [resolvable:$true] %s305
          %311 = dma.hbm_to_vmem [thread:$0]  %s1, 6144, %s306, [#allocation3], 128, 128, 8
        $region16: #{net_forward.1} parent=11 // pred_fallthru
          _
        // Predicated region
        $region17: #{net_forward.1} parent=11 // pred_check
          %p312 = pneg %p90
        $region18: #{net_forward.1} parent=11 // pred_check_branch
          %314 = sbr.rel (%p312) target = $region20
        $region19: #{net_forward.1} parent=11 // pred_region
          _
        $region20: #{net_forward.1} parent=11 // pred_fallthru
          _
        // Predicated region
        $region21: #{net_forward.1} parent=11 // pred_check
          %p315 = pneg %p111
        $region22: #{net_forward.1} parent=11 // pred_check_branch
          %317 = sbr.rel (%p315) target = $region24
        $region23: #{net_forward.1} parent=11 // pred_region
          _
        $region24: #{net_forward.1} parent=11 // pred_fallthru
          _
        // Predicated region
        $region25: #{net_forward.1} parent=11 // pred_check
          %p318 = pneg %p132
        $region26: #{net_forward.1} parent=11 // pred_check_branch
          %320 = sbr.rel (%p318) target = $region28
        $region27: #{net_forward.1} parent=11 // pred_region
          _
        $region28: #{net_forward.1} parent=11 // pred_fallthru
          _
        // Predicated region
        $region29: #{net_forward.1} parent=11 // pred_check
          %p321 = pneg %p153
        $region30: #{net_forward.1} parent=11 // pred_check_branch
          %323 = sbr.rel (%p321) target = $region32
        $region31: #{net_forward.1} parent=11 // pred_region
          %s325 = ssub.s32 5120, 5120
          %326 = vsyncadd [#allocation6], %s325
          %s327 = sshll.u32 [#allocation5], 4
          %s328 = int_to_ptr.vmem [resolvable:$true] %s327
          %333 = dma.hbm_to_vmem [thread:$0]  %s5, 5120, %s328, [#allocation6], 64, 64, 4
        $region32: #{net_forward.1} parent=11 // pred_fallthru
          _
        // Predicated region
        $region33: #{net_forward.1} parent=11 // pred_check
          %p334 = pneg %p174
        $region34: #{net_forward.1} parent=11 // pred_check_branch
          %336 = sbr.rel (%p334) target = $region36
        $region35: #{net_forward.1} parent=11 // pred_region
          _
        $region36: #{net_forward.1} parent=11 // pred_fallthru
          _
        // Predicated region
        $region37: #{net_forward.1} parent=11 // pred_check
          %p337 = pneg %p195
        $region38: #{net_forward.1} parent=11 // pred_check_branch
          %339 = sbr.rel (%p337) target = $region40
        $region39: #{net_forward.1} parent=11 // pred_region
          _
        $region40: #{net_forward.1} parent=11 // pred_fallthru
          _
        // Predicated region
        $region41: #{net_forward.1} parent=11 // pred_check
          %p340 = pneg %p216
        $region42: #{net_forward.1} parent=11 // pred_check_branch
          %342 = sbr.rel (%p340) target = $region44
        $region43: #{net_forward.1} parent=11 // pred_region
          _
        $region44: #{net_forward.1} parent=11 // pred_fallthru
          _
        // Predicated region
        $region45: #{net_forward.1} parent=11 // pred_check
          %p343 = pneg %p237
        $region46: #{net_forward.1} parent=11 // pred_check_branch
          %345 = sbr.rel (%p343) target = $region48
        $region47: #{net_forward.1} parent=11 // pred_region
          _
        $region48: #{net_forward.1} parent=11 // pred_fallthru
          _
        // Predicated region
        $region49: #{net_forward.1} parent=11 // pred_check
          %p346 = pneg %p258
        $region50: #{net_forward.1} parent=11 // pred_check_branch
          %348 = sbr.rel (%p346) target = $region52
        $region51: #{net_forward.1} parent=11 // pred_region
          _
        $region52: #{net_forward.1} parent=11 // pred_fallthru
          _
      $region12: #{net_forward.1} parent=5 // pred_fallthru
        _
      %p349 = scmp.lt.s32.totalorder %s22, 2
      // Predicated region
      $region53: #{net_forward.1} parent=5 // pred_check
        %p350 = pneg %p349
      $region54: #{net_forward.1} parent=5 // pred_check_branch
        %352 = sbr.rel (%p350) target = $region56
      $region55: #{net_forward.1} parent=5 // pred_region
        // Predicated region
        $region57: #{net_forward.1} parent=55 // pred_check
          %p353 = pneg %p42
        $region58: #{net_forward.1} parent=55 // pred_check_branch
          %355 = sbr.rel (%p353) target = $region60
        $region59: #{net_forward.1} parent=55 // pred_region
          %p356 = scmp.lt.s32.totalorder %s22, 1
          %s357 = scalar_select %p356, %s22, 1
          %s358 = smul.addr %s357, 4
          %s359 = smul.addr %s358, 8
          %s360 = scalar_lea.vmem %s0, %s359
        $region60: #{net_forward.1} parent=55 // pred_fallthru
          _
      $region56: #{net_forward.1} parent=5 // pred_fallthru
        _
      %p361 = scmp.le.s32.totalorder 1, %s22
      %p362 = scmp.lt.s32.totalorder %s22, 3
      %p363 = pnand %p361, %p362
      %p364 = pneg %p363
      // Predicated region
      $region61: #{net_forward.1} parent=5 // pred_check
        _
      $region62: #{net_forward.1} parent=5 // pred_check_branch
        %366 = sbr.rel (%p363) target = $region64
      $region63: #{net_forward.1} parent=5 // pred_region
        %s367 = ssub.s32 %s22, 1
        // Predicated region
        $region65: #{net_forward.1} parent=63 // pred_check
          %p368 = pneg %p69
        $region66: #{net_forward.1} parent=63 // pred_check_branch
          %370 = sbr.rel (%p368) target = $region68
        $region67: #{net_forward.1} parent=63 // pred_region
          %371 = dma.done [#allocation3], 6144
        $region68: #{net_forward.1} parent=63 // pred_fallthru
          _
        // Predicated region
        $region69: #{net_forward.1} parent=63 // pred_check
          %p372 = pneg %p153
        $region70: #{net_forward.1} parent=63 // pred_check_branch
          %374 = sbr.rel (%p372) target = $region72
        $region71: #{net_forward.1} parent=63 // pred_region
          %375 = dma.done [#allocation6], 5120
        $region72: #{net_forward.1} parent=63 // pred_fallthru
          _
        %p376 = scmp.lt.s32.totalorder %s27, 1
        %s377 = scalar_select %p376, %s27, 1
        %s378 = smul.addr %s377, 4
        %s379 = smul.addr %s378, 8
        %s380 = scalar_lea.vmem %s0, %s379
        %p381 = pneg %p48
        %p382 = pneg %p45
        %p383 = pneg %p69
        %p384 = pneg %p66
        %p385 = pneg %p90
        %p386 = pneg %p87
        %p387 = pneg %p111
        %p388 = pneg %p108
        %p389 = pneg %p132
        %p390 = pneg %p129
        %p391 = pneg %p153
        %p392 = pneg %p150
        %p393 = pneg %p174
        %p394 = pneg %p171
        %p395 = pneg %p195
        %p396 = pneg %p192
        %p397 = pneg %p216
        %p398 = pneg %p213
        %p399 = pneg %p237
        %p400 = pneg %p234
        %p401 = pneg %p258
        %p402 = pneg %p255
        %p403 = pneg %p284
        %p404 = pneg %p281
        %s405 = sand.u32 %s271, 1
        %s406 = scalar_lea.sflag [#allocation4], %s405
        %s407 = sand.u32 %s271, 1
        %s408 = scalar_lea.vmem [#allocation7], %s407
        %p409 = scmp.lt.s32.totalorder %s27, 1
        %s410 = scalar_select %p409, %s27, 1
        %s411 = smul.addr %s410, 4
        %s412 = smul.addr %s411, 8
        %s413 = scalar_lea.vmem %s0, %s412
        %v415 = vld [vmem:[%s413] sm:$0xff]
        %v416 = vld [vmem:[%s413 + $0x8] sm:$0xff]
        %v417 = vld [vmem:[%s413 + $0x10] sm:$0xff]
        %v418 = vld [vmem:[%s413 + $0x18] sm:$0xff]
        %v419 = vpack.c.bf16 %v416, %v415
        %v420 = vpack.c.bf16 %v418, %v417
        %v421 = vld [vmem:[#allocation2] sm:$0xff]
        %v422 = vld [vmem:[#allocation2 + $0x8] sm:$0xff]
        %v423 = vld [vmem:[#allocation2 + $0x10] sm:$0xff]
        %v424 = vld [vmem:[#allocation2 + $0x18] sm:$0xff]
        %v425 = vld [vmem:[#allocation2 + $0x20] sm:$0xff]
        %v426 = vld [vmem:[#allocation2 + $0x28] sm:$0xff]
        %v427 = vld [vmem:[#allocation2 + $0x30] sm:$0xff]
        %v428 = vld [vmem:[#allocation2 + $0x38] sm:$0xff]
        %v429 = vld [vmem:[#allocation2 + $0x40] sm:$0xff]
        %v430 = vld [vmem:[#allocation2 + $0x48] sm:$0xff]
        %v431 = vld [vmem:[#allocation2 + $0x50] sm:$0xff]
        %v432 = vld [vmem:[#allocation2 + $0x58] sm:$0xff]
        %v433 = vld [vmem:[#allocation2 + $0x60] sm:$0xff]
        %v434 = vld [vmem:[#allocation2 + $0x68] sm:$0xff]
        %v435 = vld [vmem:[#allocation2 + $0x70] sm:$0xff]
        %v436 = vld [vmem:[#allocation2 + $0x78] sm:$0xff]
        %s437 = scalar_lea.vmem [#allocation2], 128
        %v438 = vld [vmem:[%s437] sm:$0xff]
        %v439 = vld [vmem:[%s437 + $0x8] sm:$0xff]
        %v440 = vld [vmem:[%s437 + $0x10] sm:$0xff]
        %v441 = vld [vmem:[%s437 + $0x18] sm:$0xff]
        %v442 = vld [vmem:[%s437 + $0x20] sm:$0xff]
        %v443 = vld [vmem:[%s437 + $0x28] sm:$0xff]
        %v444 = vld [vmem:[%s437 + $0x30] sm:$0xff]
        %v445 = vld [vmem:[%s437 + $0x38] sm:$0xff]
        %v446 = vld [vmem:[%s437 + $0x40] sm:$0xff]
        %v447 = vld [vmem:[%s437 + $0x48] sm:$0xff]
        %v448 = vld [vmem:[%s437 + $0x50] sm:$0xff]
        %v449 = vld [vmem:[%s437 + $0x58] sm:$0xff]
        %v450 = vld [vmem:[%s437 + $0x60] sm:$0xff]
        %v451 = vld [vmem:[%s437 + $0x68] sm:$0xff]
        %v452 = vld [vmem:[%s437 + $0x70] sm:$0xff]
        %v453 = vld [vmem:[%s437 + $0x78] sm:$0xff]
        %vm454 = vsmask.f32 7424
        %v456 = vshrl.u32 %v419, 16
        %v458 = vshll.u32 %v419, 16
        %v460 = vrot.slane %v458, 1
        %v461 = vor.u32 %v456, %v460
        %v463 = vshll.u32 %v420, 16
        %v465 = vrot.slane %v463, 1
        %v466 = vsel %vm454, %v461, %v465
        %v467 = vshrl.u32 %v420, 16
        %v469 = vor.u32 %v467, %v465
        %v488 = vunpack.c.l.b16 %v438
        %v489 = vunpack.c.h.b16 %v438
        %v490 = vunpack.c.l.b16 %v439
        %v491 = vunpack.c.h.b16 %v439
        %v492 = vunpack.c.l.b16 %v440
        %v493 = vunpack.c.h.b16 %v440
        %v494 = vunpack.c.l.b16 %v441
        %v495 = vunpack.c.h.b16 %v441
        %v496 = vunpack.c.l.b16 %v442
        %v497 = vunpack.c.h.b16 %v442
        %v498 = vunpack.c.l.b16 %v443
        %v499 = vunpack.c.h.b16 %v443
        %v500 = vunpack.c.l.b16 %v444
        %v501 = vunpack.c.h.b16 %v444
        %v502 = vunpack.c.l.b16 %v445
        %v503 = vunpack.c.h.b16 %v445
        %v504 = vunpack.c.l.b16 %v446
        %v505 = vunpack.c.h.b16 %v446
        %v506 = vunpack.c.l.b16 %v447
        %v507 = vunpack.c.h.b16 %v447
        %v508 = vunpack.c.l.b16 %v448
        %v509 = vunpack.c.h.b16 %v448
        %v510 = vunpack.c.l.b16 %v449
        %v511 = vunpack.c.h.b16 %v449
        %v512 = vunpack.c.l.b16 %v450
        %v513 = vunpack.c.h.b16 %v450
        %v514 = vunpack.c.l.b16 %v451
        %v515 = vunpack.c.h.b16 %v451
        %v516 = vunpack.c.l.b16 %v452
        %v517 = vunpack.c.h.b16 %v452
        %v518 = vunpack.c.l.b16 %v453
        %v519 = vunpack.c.h.b16 %v453
        %v520 = vpack.c.b16 %v490, %v488
        %v521 = vpack.c.b16 %v491, %v489
        %v522 = vpack.c.b16 %v494, %v492
        %v523 = vpack.c.b16 %v495, %v493
        %v524 = vpack.c.b16 %v498, %v496
        %v525 = vpack.c.b16 %v499, %v497
        %v526 = vpack.c.b16 %v502, %v500
        %v527 = vpack.c.b16 %v503, %v501
        %v528 = vpack.c.b16 %v506, %v504
        %v529 = vpack.c.b16 %v507, %v505
        %v530 = vpack.c.b16 %v510, %v508
        %v531 = vpack.c.b16 %v511, %v509
        %v532 = vpack.c.b16 %v514, %v512
        %v533 = vpack.c.b16 %v515, %v513
        %v534 = vpack.c.b16 %v518, %v516
        %v535 = vpack.c.b16 %v519, %v517
        %552 = vmatprep.subr.bf16.mxu0 %v521
        %553 = vmatpush1.bf16.msra.mxu0 %v520
        %554 = vmatprep.subr.bf16.mxu0 %v523
        %555 = vmatpush1.bf16.msra.mxu0 %v522
        %556 = vmatprep.subr.bf16.mxu0 %v525
        %557 = vmatpush1.bf16.msra.mxu0 %v524
        %558 = vmatprep.subr.bf16.mxu0 %v527
        %559 = vmatpush1.bf16.msra.mxu0 %v526
        %560 = vmatprep.subr.bf16.mxu0 %v529
        %561 = vmatpush1.bf16.msra.mxu0 %v528
        %562 = vmatprep.subr.bf16.mxu0 %v531
        %563 = vmatpush1.bf16.msra.mxu0 %v530
        %564 = vmatprep.subr.bf16.mxu0 %v533
        %565 = vmatpush1.bf16.msra.mxu0 %v532
        %566 = vmatprep.subr.bf16.mxu0 %v535
        %567 = vmatpush1.bf16.msra.mxu0 %v534
        %568 = vmatprep.subr.bf16.mxu0 0
        %569 = vmatpush1.bf16.msra.mxu0 0
        %570 = vmatprep.subr.bf16.mxu0 0
        %571 = vmatpush1.bf16.msra.mxu0 0
        %572 = vmatprep.subr.bf16.mxu0 0
        %573 = vmatpush1.bf16.msra.mxu0 0
        %574 = vmatprep.subr.bf16.mxu0 0
        %575 = vmatpush1.bf16.msra.mxu0 0
        %576 = vmatprep.subr.bf16.mxu0 0
        %577 = vmatpush1.bf16.msra.mxu0 0
        %578 = vmatprep.subr.bf16.mxu0 0
        %579 = vmatpush1.bf16.msra.mxu0 0
        %580 = vmatprep.subr.bf16.mxu0 0
        %581 = vmatpush1.bf16.msra.mxu0 0
        %582 = vmatprep.subr.bf16.mxu0 0
        %583 = vmatpush1.bf16.msra.mxu0 0
        %584 = vmatprep.mubr.bf16.mxu0 0
        %585 = vmatmul.mubr.bf16.gmra.mrb[0].mxu0 %v466
        %v586 = vpop.f32.mrb[0].mxu0
        %v587 = vadd.f32 0.0, %v586
        %v588 = vpop.f32.mrb[0].mxu0
        %v589 = vadd.f32 0.0, %v588
        %v590 = vpop.f32.mrb[0].mxu0
        %v591 = vadd.f32 0.0, %v590
        %v592 = vpop.f32.mrb[0].mxu0
        %v593 = vadd.f32 0.0, %v592
        %594 = vmatprep.mubr.bf16.mxu0 0
        %595 = vmatmul.mubr.bf16.gmra.mrb[0].mxu0 %v469
        %v596 = vpop.f32.mrb[0].mxu0
        %v597 = vadd.f32 0.0, %v596
        %v598 = vpop.f32.mrb[0].mxu0
        %v599 = vadd.f32 0.0, %v598
        %v600 = vpop.f32.mrb[0].mxu0
        %v601 = vadd.f32 0.0, %v600
        %v602 = vpop.f32.mrb[0].mxu0
        %v603 = vadd.f32 0.0, %v602
        %604 = vdwg.mxu0
        %v621 = vunpack.c.l.b16 %v421
        %v622 = vunpack.c.h.b16 %v421
        %v623 = vunpack.c.l.b16 %v422
        %v624 = vunpack.c.h.b16 %v422
        %v625 = vunpack.c.l.b16 %v423
        %v626 = vunpack.c.h.b16 %v423
        %v627 = vunpack.c.l.b16 %v424
        %v628 = vunpack.c.h.b16 %v424
        %v629 = vunpack.c.l.b16 %v425
        %v630 = vunpack.c.h.b16 %v425
        %v631 = vunpack.c.l.b16 %v426
        %v632 = vunpack.c.h.b16 %v426
        %v633 = vunpack.c.l.b16 %v427
        %v634 = vunpack.c.h.b16 %v427
        %v635 = vunpack.c.l.b16 %v428
        %v636 = vunpack.c.h.b16 %v428
        %v637 = vunpack.c.l.b16 %v429
        %v638 = vunpack.c.h.b16 %v429
        %v639 = vunpack.c.l.b16 %v430
        %v640 = vunpack.c.h.b16 %v430
        %v641 = vunpack.c.l.b16 %v431
        %v642 = vunpack.c.h.b16 %v431
        %v643 = vunpack.c.l.b16 %v432
        %v644 = vunpack.c.h.b16 %v432
        %v645 = vunpack.c.l.b16 %v433
        %v646 = vunpack.c.h.b16 %v433
        %v647 = vunpack.c.l.b16 %v434
        %v648 = vunpack.c.h.b16 %v434
        %v649 = vunpack.c.l.b16 %v435
        %v650 = vunpack.c.h.b16 %v435
        %v651 = vunpack.c.l.b16 %v436
        %v652 = vunpack.c.h.b16 %v436
        %v653 = vpack.c.b16 %v623, %v621
        %v654 = vpack.c.b16 %v624, %v622
        %v655 = vpack.c.b16 %v627, %v625
        %v656 = vpack.c.b16 %v628, %v626
        %v657 = vpack.c.b16 %v631, %v629
        %v658 = vpack.c.b16 %v632, %v630
        %v659 = vpack.c.b16 %v635, %v633
        %v660 = vpack.c.b16 %v636, %v634
        %v661 = vpack.c.b16 %v639, %v637
        %v662 = vpack.c.b16 %v640, %v638
        %v663 = vpack.c.b16 %v643, %v641
        %v664 = vpack.c.b16 %v644, %v642
        %v665 = vpack.c.b16 %v647, %v645
        %v666 = vpack.c.b16 %v648, %v646
        %v667 = vpack.c.b16 %v651, %v649
        %v668 = vpack.c.b16 %v652, %v650
        %685 = vmatprep.subr.bf16.mxu0 %v654
        %686 = vmatpush1.bf16.msra.mxu0 %v653
        %687 = vmatprep.subr.bf16.mxu0 %v656
        %688 = vmatpush1.bf16.msra.mxu0 %v655
        %689 = vmatprep.subr.bf16.mxu0 %v658
        %690 = vmatpush1.bf16.msra.mxu0 %v657
        %691 = vmatprep.subr.bf16.mxu0 %v660
        %692 = vmatpush1.bf16.msra.mxu0 %v659
        %693 = vmatprep.subr.bf16.mxu0 %v662
        %694 = vmatpush1.bf16.msra.mxu0 %v661
        %695 = vmatprep.subr.bf16.mxu0 %v664
        %696 = vmatpush1.bf16.msra.mxu0 %v663
        %697 = vmatprep.subr.bf16.mxu0 %v666
        %698 = vmatpush1.bf16.msra.mxu0 %v665
        %699 = vmatprep.subr.bf16.mxu0 %v668
        %700 = vmatpush1.bf16.msra.mxu0 %v667
        %701 = vmatprep.subr.bf16.mxu0 0
        %702 = vmatpush1.bf16.msra.mxu0 0
        %703 = vmatprep.subr.bf16.mxu0 0
        %704 = vmatpush1.bf16.msra.mxu0 0
        %705 = vmatprep.subr.bf16.mxu0 0
        %706 = vmatpush1.bf16.msra.mxu0 0
        %707 = vmatprep.subr.bf16.mxu0 0
        %708 = vmatpush1.bf16.msra.mxu0 0
        %709 = vmatprep.subr.bf16.mxu0 0
        %710 = vmatpush1.bf16.msra.mxu0 0
        %711 = vmatprep.subr.bf16.mxu0 0
        %712 = vmatpush1.bf16.msra.mxu0 0
        %713 = vmatprep.subr.bf16.mxu0 0
        %714 = vmatpush1.bf16.msra.mxu0 0
        %715 = vmatprep.subr.bf16.mxu0 0
        %716 = vmatpush1.bf16.msra.mxu0 0
        %717 = vmatprep.mubr.bf16.mxu0 0
        %718 = vmatmul.mubr.bf16.gmra.mrb[0].mxu0 %v419
        %v719 = vpop.f32.mrb[0].mxu0
        %v720 = vadd.f32 %v587, %v719
        %v721 = vpop.f32.mrb[0].mxu0
        %v722 = vadd.f32 %v589, %v721
        %v723 = vpop.f32.mrb[0].mxu0
        %v724 = vadd.f32 %v591, %v723
        %v725 = vpop.f32.mrb[0].mxu0
        %v726 = vadd.f32 %v593, %v725
        %727 = vmatprep.mubr.bf16.mxu0 0
        %728 = vmatmul.mubr.bf16.gmra.mrb[0].mxu0 %v420
        %v729 = vpop.f32.mrb[0].mxu0
        %v730 = vadd.f32 %v597, %v729
        %v731 = vpop.f32.mrb[0].mxu0
        %v732 = vadd.f32 %v599, %v731
        %v733 = vpop.f32.mrb[0].mxu0
        %v734 = vadd.f32 %v601, %v733
        %v735 = vpop.f32.mrb[0].mxu0
        %v736 = vadd.f32 %v603, %v735
        %737 = vdwg.mxu0
        %s738 = scalar_lea.vmem [#allocation2], 256
        %v739 = vld [vmem:[%s738] sm:$0xff]
        %v740 = vld [vmem:[%s738 + $0x8] sm:$0xff]
        %v741 = vld [vmem:[%s738 + $0x10] sm:$0xff]
        %v742 = vld [vmem:[%s738 + $0x18] sm:$0xff]
        %v743 = vld [vmem:[%s738 + $0x20] sm:$0xff]
        %v744 = vld [vmem:[%s738 + $0x28] sm:$0xff]
        %v745 = vld [vmem:[%s738 + $0x30] sm:$0xff]
        %v746 = vld [vmem:[%s738 + $0x38] sm:$0xff]
        %v747 = vld [vmem:[%s738 + $0x40] sm:$0xff]
        %v748 = vld [vmem:[%s738 + $0x48] sm:$0xff]
        %v749 = vld [vmem:[%s738 + $0x50] sm:$0xff]
        %v750 = vld [vmem:[%s738 + $0x58] sm:$0xff]
        %v751 = vld [vmem:[%s738 + $0x60] sm:$0xff]
        %v752 = vld [vmem:[%s738 + $0x68] sm:$0xff]
        %v753 = vld [vmem:[%s738 + $0x70] sm:$0xff]
        %v754 = vld [vmem:[%s738 + $0x78] sm:$0xff]
        %vm757 = vcmask 1046528
        %v758 = vrot.slane %v419, 1
        %v759 = vrot.slane %v420, 1
        %v760 = vsel %vm757, %v758, %v759
        %v779 = vunpack.c.l.b16 %v739
        %v780 = vunpack.c.h.b16 %v739
        %v781 = vunpack.c.l.b16 %v740
        %v782 = vunpack.c.h.b16 %v740
        %v783 = vunpack.c.l.b16 %v741
        %v784 = vunpack.c.h.b16 %v741
        %v785 = vunpack.c.l.b16 %v742
        %v786 = vunpack.c.h.b16 %v742
        %v787 = vunpack.c.l.b16 %v743
        %v788 = vunpack.c.h.b16 %v743
        %v789 = vunpack.c.l.b16 %v744
        %v790 = vunpack.c.h.b16 %v744
        %v791 = vunpack.c.l.b16 %v745
        %v792 = vunpack.c.h.b16 %v745
        %v793 = vunpack.c.l.b16 %v746
        %v794 = vunpack.c.h.b16 %v746
        %v795 = vunpack.c.l.b16 %v747
        %v796 = vunpack.c.h.b16 %v747
        %v797 = vunpack.c.l.b16 %v748
        %v798 = vunpack.c.h.b16 %v748
        %v799 = vunpack.c.l.b16 %v749
        %v800 = vunpack.c.h.b16 %v749
        %v801 = vunpack.c.l.b16 %v750
        %v802 = vunpack.c.h.b16 %v750
        %v803 = vunpack.c.l.b16 %v751
        %v804 = vunpack.c.h.b16 %v751
        %v805 = vunpack.c.l.b16 %v752
        %v806 = vunpack.c.h.b16 %v752
        %v807 = vunpack.c.l.b16 %v753
        %v808 = vunpack.c.h.b16 %v753
        %v809 = vunpack.c.l.b16 %v754
        %v810 = vunpack.c.h.b16 %v754
        %v811 = vpack.c.b16 %v781, %v779
        %v812 = vpack.c.b16 %v782, %v780
        %v813 = vpack.c.b16 %v785, %v783
        %v814 = vpack.c.b16 %v786, %v784
        %v815 = vpack.c.b16 %v789, %v787
        %v816 = vpack.c.b16 %v790, %v788
        %v817 = vpack.c.b16 %v793, %v791
        %v818 = vpack.c.b16 %v794, %v792
        %v819 = vpack.c.b16 %v797, %v795
        %v820 = vpack.c.b16 %v798, %v796
        %v821 = vpack.c.b16 %v801, %v799
        %v822 = vpack.c.b16 %v802, %v800
        %v823 = vpack.c.b16 %v805, %v803
        %v824 = vpack.c.b16 %v806, %v804
        %v825 = vpack.c.b16 %v809, %v807
        %v826 = vpack.c.b16 %v810, %v808
        %843 = vmatprep.subr.bf16.mxu0 %v812
        %844 = vmatpush1.bf16.msra.mxu0 %v811
        %845 = vmatprep.subr.bf16.mxu0 %v814
        %846 = vmatpush1.bf16.msra.mxu0 %v813
        %847 = vmatprep.subr.bf16.mxu0 %v816
        %848 = vmatpush1.bf16.msra.mxu0 %v815
        %849 = vmatprep.subr.bf16.mxu0 %v818
        %850 = vmatpush1.bf16.msra.mxu0 %v817
        %851 = vmatprep.subr.bf16.mxu0 %v820
        %852 = vmatpush1.bf16.msra.mxu0 %v819
        %853 = vmatprep.subr.bf16.mxu0 %v822
        %854 = vmatpush1.bf16.msra.mxu0 %v821
        %855 = vmatprep.subr.bf16.mxu0 %v824
        %856 = vmatpush1.bf16.msra.mxu0 %v823
        %857 = vmatprep.subr.bf16.mxu0 %v826
        %858 = vmatpush1.bf16.msra.mxu0 %v825
        %859 = vmatprep.subr.bf16.mxu0 0
        %860 = vmatpush1.bf16.msra.mxu0 0
        %861 = vmatprep.subr.bf16.mxu0 0
        %862 = vmatpush1.bf16.msra.mxu0 0
        %863 = vmatprep.subr.bf16.mxu0 0
        %864 = vmatpush1.bf16.msra.mxu0 0
        %865 = vmatprep.subr.bf16.mxu0 0
        %866 = vmatpush1.bf16.msra.mxu0 0
        %867 = vmatprep.subr.bf16.mxu0 0
        %868 = vmatpush1.bf16.msra.mxu0 0
        %869 = vmatprep.subr.bf16.mxu0 0
        %870 = vmatpush1.bf16.msra.mxu0 0
        %871 = vmatprep.subr.bf16.mxu0 0
        %872 = vmatpush1.bf16.msra.mxu0 0
        %873 = vmatprep.subr.bf16.mxu0 0
        %874 = vmatpush1.bf16.msra.mxu0 0
        %875 = vmatprep.mubr.bf16.mxu0 0
        %876 = vmatmul.mubr.bf16.gmra.mrb[0].mxu0 %v760
        %v877 = vpop.f32.mrb[0].mxu0
        %v878 = vadd.f32 0.0, %v877
        %v879 = vpop.f32.mrb[0].mxu0
        %v880 = vadd.f32 0.0, %v879
        %v881 = vpop.f32.mrb[0].mxu0
        %v882 = vadd.f32 0.0, %v881
        %v883 = vpop.f32.mrb[0].mxu0
        %v884 = vadd.f32 0.0, %v883
        %885 = vmatprep.mubr.bf16.mxu0 0
        %886 = vmatmul.mubr.bf16.gmra.mrb[0].mxu0 %v759
        %v887 = vpop.f32.mrb[0].mxu0
        %v888 = vadd.f32 0.0, %v887
        %v889 = vpop.f32.mrb[0].mxu0
        %v890 = vadd.f32 0.0, %v889
        %v891 = vpop.f32.mrb[0].mxu0
        %v892 = vadd.f32 0.0, %v891
        %v893 = vpop.f32.mrb[0].mxu0
        %v894 = vadd.f32 0.0, %v893
        %895 = vdwg.mxu0
        %v896 = vadd.f32 %v720, %v878
        %v897 = vadd.f32 %v722, %v880
        %v898 = vadd.f32 %v724, %v882
        %v899 = vadd.f32 %v726, %v884
        %v900 = vadd.f32 %v730, %v888
        %v901 = vadd.f32 %v732, %v890
        %v902 = vadd.f32 %v734, %v892
        %v903 = vadd.f32 %v736, %v894
        %v904 = vld [vmem:[%s2] sm:$0x3]
        %v906 = vlaneseq
        %v907 = vshrl.u32 %v906, 7
        %v908 = vsub.s32 0, %v907
        %v909 = vrot.slane %v904, %v908
        %v910 = vlaneseq
        %v911 = vshrl.u32 %v910, 7
        %v912 = vsub.s32 1, %v911
        %v913 = vrot.slane %v904, %v912
        %v916 = vadd.f32 %v896, %v909
        %v917 = vadd.f32 %v897, %v913
        %v918 = vadd.f32 %v898, %v909
        %v919 = vadd.f32 %v899, %v913
        %v920 = vadd.f32 %v900, %v909
        %v921 = vadd.f32 %v901, %v913
        %v922 = vadd.f32 %v902, %v909
        %v923 = vadd.f32 %v903, %v913
        %v924 = vmax.f32 %v916, 0.0
        %v925 = vmax.f32 %v917, 0.0
        %v926 = vmax.f32 %v918, 0.0
        %v927 = vmax.f32 %v919, 0.0
        %v928 = vmax.f32 %v920, 0.0
        %v929 = vmax.f32 %v921, 0.0
        %v930 = vmax.f32 %v922, 0.0
        %v931 = vmax.f32 %v923, 0.0
        %v932 = vmax.f32 %v924, %v925
        %v933 = vmax.f32 %v926, %v927
        %v934 = vmax.f32 %v928, %v929
        %v935 = vmax.f32 %v930, %v931
        %v936 = vpack.c.bf16 %v933, %v932
        %v937 = vpack.c.bf16 %v935, %v934
        %v938 = vlaneseq
        %v939 = vshrl.u32 %v938, 7
        %v940 = vadd.s32 %v939, 8
        %v941 = vlaneseq
        %v942 = vand.u32 %v941, 127
        %v943 = vmul.u32 %v939, 2
        %v944 = vmul.u32 %v940, 2
        %vm945 = vcmp.eq.s32.totalorder %v942, %v943
        %vm946 = vcmp.eq.s32.totalorder %v942, %v944
        %v947 = vsel %vm945, 1, 0
        %v948 = vsel %vm946, 1, 0
        %v949 = vcvt.s32.f32 %v947
        %v950 = vcvt.s32.f32 %v948
        %v951 = vpack.c.bf16 %v950, %v949
        %vm952 = vcmask 244736
        %v954 = vsel %vm952, %v951, 0
        %vm956 = vcmask 1046528
        %v958 = vsel %vm956, %v937, 0
        %960 = vmatprep.subr.bf16.mxu0 0
        %961 = vmatpush1.bf16.msra.mxu0 %v936
        %962 = vmatprep.subr.bf16.mxu0 0
        %963 = vmatpush1.bf16.msra.mxu0 %v958
        %964 = vmatprep.subr.bf16.mxu0 0
        %965 = vmatpush1.bf16.msra.mxu0 0
        %966 = vmatprep.subr.bf16.mxu0 0
        %967 = vmatpush1.bf16.msra.mxu0 0
        %968 = vmatprep.subr.bf16.mxu0 0
        %969 = vmatpush1.bf16.msra.mxu0 0
        %970 = vmatprep.subr.bf16.mxu0 0
        %971 = vmatpush1.bf16.msra.mxu0 0
        %972 = vmatprep.subr.bf16.mxu0 0
        %973 = vmatpush1.bf16.msra.mxu0 0
        %974 = vmatprep.subr.bf16.mxu0 0
        %975 = vmatpush1.bf16.msra.mxu0 0
        %976 = vmatprep.subr.bf16.mxu0 0
        %977 = vmatpush1.bf16.msra.mxu0 0
        %978 = vmatprep.subr.bf16.mxu0 0
        %979 = vmatpush1.bf16.msra.mxu0 0
        %980 = vmatprep.subr.bf16.mxu0 0
        %981 = vmatpush1.bf16.msra.mxu0 0
        %982 = vmatprep.subr.bf16.mxu0 0
        %983 = vmatpush1.bf16.msra.mxu0 0
        %984 = vmatprep.subr.bf16.mxu0 0
        %985 = vmatpush1.bf16.msra.mxu0 0
        %986 = vmatprep.subr.bf16.mxu0 0
        %987 = vmatpush1.bf16.msra.mxu0 0
        %988 = vmatprep.subr.bf16.mxu0 0
        %989 = vmatpush1.bf16.msra.mxu0 0
        %990 = vmatprep.subr.bf16.mxu0 0
        %991 = vmatpush1.bf16.msra.mxu0 0
        %992 = vmatprep.mubr.bf16.mxu0 0
        %993 = vmatmul.mubr.bf16.gmra.mrb[0].mxu0 %v954
        %v994 = vpop.f32.mrb[0].mxu0
        %v995 = vadd.f32 0.0, %v994
        %v996 = vpop.f32.mrb[0].mxu0
        %v997 = vpop.f32.mrb[0].mxu0
        %v998 = vadd.f32 0.0, %v997
        %v999 = vpop.f32.mrb[0].mxu0
        %1000 = vdwg.mxu0
        %v1001 = vadd.s32 %v943, 1
        %v1002 = vadd.s32 %v944, 1
        %vm1003 = vcmp.eq.s32.totalorder %v942, %v1001
        %vm1004 = vcmp.eq.s32.totalorder %v942, %v1002
        %v1005 = vsel %vm1003, 1, 0
        %v1006 = vsel %vm1004, 1, 0
        %v1007 = vcvt.s32.f32 %v1005
        %v1008 = vcvt.s32.f32 %v1006
        %v1009 = vpack.c.bf16 %v1008, %v1007
        %v1011 = vsel %vm952, %v1009, 0
        %1013 = vmatprep.subr.bf16.mxu0 0
        %1014 = vmatpush1.bf16.msra.mxu0 %v936
        %1015 = vmatprep.subr.bf16.mxu0 0
        %1016 = vmatpush1.bf16.msra.mxu0 %v958
        %1017 = vmatprep.subr.bf16.mxu0 0
        %1018 = vmatpush1.bf16.msra.mxu0 0
        %1019 = vmatprep.subr.bf16.mxu0 0
        %1020 = vmatpush1.bf16.msra.mxu0 0
        %1021 = vmatprep.subr.bf16.mxu0 0
        %1022 = vmatpush1.bf16.msra.mxu0 0
        %1023 = vmatprep.subr.bf16.mxu0 0
        %1024 = vmatpush1.bf16.msra.mxu0 0
        %1025 = vmatprep.subr.bf16.mxu0 0
        %1026 = vmatpush1.bf16.msra.mxu0 0
        %1027 = vmatprep.subr.bf16.mxu0 0
        %1028 = vmatpush1.bf16.msra.mxu0 0
        %1029 = vmatprep.subr.bf16.mxu0 0
        %1030 = vmatpush1.bf16.msra.mxu0 0
        %1031 = vmatprep.subr.bf16.mxu0 0
        %1032 = vmatpush1.bf16.msra.mxu0 0
        %1033 = vmatprep.subr.bf16.mxu0 0
        %1034 = vmatpush1.bf16.msra.mxu0 0
        %1035 = vmatprep.subr.bf16.mxu0 0
        %1036 = vmatpush1.bf16.msra.mxu0 0
        %1037 = vmatprep.subr.bf16.mxu0 0
        %1038 = vmatpush1.bf16.msra.mxu0 0
        %1039 = vmatprep.subr.bf16.mxu0 0
        %1040 = vmatpush1.bf16.msra.mxu0 0
        %1041 = vmatprep.subr.bf16.mxu0 0
        %1042 = vmatpush1.bf16.msra.mxu0 0
        %1043 = vmatprep.subr.bf16.mxu0 0
        %1044 = vmatpush1.bf16.msra.mxu0 0
        %1045 = vmatprep.mubr.bf16.mxu0 0
        %1046 = vmatmul.mubr.bf16.gmra.mrb[0].mxu0 %v1011
        %v1047 = vpop.f32.mrb[0].mxu0
        %v1048 = vadd.f32 0.0, %v1047
        %v1049 = vpop.f32.mrb[0].mxu0
        %v1050 = vpop.f32.mrb[0].mxu0
        %v1051 = vadd.f32 0.0, %v1050
        %v1052 = vpop.f32.mrb[0].mxu0
        %1053 = vdwg.mxu0
        %v1054 = vmax.f32 %v995, %v1048
        %v1055 = vmax.f32 %v998, %v1051
        %v1056 = vpack.c.bf16 %v1055, %v1054
        %v1057 = vld [vmem:[%s3] sm:$0xff]
        %v1058 = vld [vmem:[%s3 + $0x8] sm:$0xff]
        %v1059 = vld [vmem:[%s3 + $0x10] sm:$0xff]
        %v1060 = vld [vmem:[%s3 + $0x18] sm:$0xff]
        %v1061 = vld [vmem:[%s3 + $0x20] sm:$0xff]
        %v1062 = vld [vmem:[%s3 + $0x28] sm:$0xff]
        %v1063 = vld [vmem:[%s3 + $0x30] sm:$0xff]
        %v1064 = vld [vmem:[%s3 + $0x38] sm:$0xff]
        %v1065 = vld [vmem:[%s3 + $0x40] sm:$0xff]
        %v1066 = vld [vmem:[%s3 + $0x48] sm:$0xff]
        %v1067 = vld [vmem:[%s3 + $0x50] sm:$0xff]
        %v1068 = vld [vmem:[%s3 + $0x58] sm:$0xff]
        %v1069 = vld [vmem:[%s3 + $0x60] sm:$0xff]
        %v1070 = vld [vmem:[%s3 + $0x68] sm:$0xff]
        %v1071 = vld [vmem:[%s3 + $0x70] sm:$0xff]
        %v1072 = vld [vmem:[%s3 + $0x78] sm:$0xff]
        %s1073 = scalar_lea.vmem %s3, 128
        %v1074 = vld [vmem:[%s1073] sm:$0xff]
        %v1075 = vld [vmem:[%s1073 + $0x8] sm:$0xff]
        %v1076 = vld [vmem:[%s1073 + $0x10] sm:$0xff]
        %v1077 = vld [vmem:[%s1073 + $0x18] sm:$0xff]
        %v1078 = vld [vmem:[%s1073 + $0x20] sm:$0xff]
        %v1079 = vld [vmem:[%s1073 + $0x28] sm:$0xff]
        %v1080 = vld [vmem:[%s1073 + $0x30] sm:$0xff]
        %v1081 = vld [vmem:[%s1073 + $0x38] sm:$0xff]
        %v1082 = vld [vmem:[%s1073 + $0x40] sm:$0xff]
        %v1083 = vld [vmem:[%s1073 + $0x48] sm:$0xff]
        %v1084 = vld [vmem:[%s1073 + $0x50] sm:$0xff]
        %v1085 = vld [vmem:[%s1073 + $0x58] sm:$0xff]
        %v1086 = vld [vmem:[%s1073 + $0x60] sm:$0xff]
        %v1087 = vld [vmem:[%s1073 + $0x68] sm:$0xff]
        %v1088 = vld [vmem:[%s1073 + $0x70] sm:$0xff]
        %v1089 = vld [vmem:[%s1073 + $0x78] sm:$0xff]
        %v1091 = vshrl.u32 %v1056, 16
        %v1093 = vshll.u32 %v1056, 16
        %v1095 = vrot.slane %v1093, 1
        %v1096 = vor.u32 %v1091, %v1095
        %v1114 = vunpack.c.l.b16 %v1074
        %v1115 = vunpack.c.h.b16 %v1074
        %v1116 = vunpack.c.l.b16 %v1075
        %v1117 = vunpack.c.h.b16 %v1075
        %v1118 = vunpack.c.l.b16 %v1076
        %v1119 = vunpack.c.h.b16 %v1076
        %v1120 = vunpack.c.l.b16 %v1077
        %v1121 = vunpack.c.h.b16 %v1077
        %v1122 = vunpack.c.l.b16 %v1078
        %v1123 = vunpack.c.h.b16 %v1078
        %v1124 = vunpack.c.l.b16 %v1079
        %v1125 = vunpack.c.h.b16 %v1079
        %v1126 = vunpack.c.l.b16 %v1080
        %v1127 = vunpack.c.h.b16 %v1080
        %v1128 = vunpack.c.l.b16 %v1081
        %v1129 = vunpack.c.h.b16 %v1081
        %v1130 = vunpack.c.l.b16 %v1082
        %v1131 = vunpack.c.h.b16 %v1082
        %v1132 = vunpack.c.l.b16 %v1083
        %v1133 = vunpack.c.h.b16 %v1083
        %v1134 = vunpack.c.l.b16 %v1084
        %v1135 = vunpack.c.h.b16 %v1084
        %v1136 = vunpack.c.l.b16 %v1085
        %v1137 = vunpack.c.h.b16 %v1085
        %v1138 = vunpack.c.l.b16 %v1086
        %v1139 = vunpack.c.h.b16 %v1086
        %v1140 = vunpack.c.l.b16 %v1087
        %v1141 = vunpack.c.h.b16 %v1087
        %v1142 = vunpack.c.l.b16 %v1088
        %v1143 = vunpack.c.h.b16 %v1088
        %v1144 = vunpack.c.l.b16 %v1089
        %v1145 = vunpack.c.h.b16 %v1089
        %v1146 = vpack.c.b16 %v1116, %v1114
        %v1147 = vpack.c.b16 %v1117, %v1115
        %v1148 = vpack.c.b16 %v1120, %v1118
        %v1149 = vpack.c.b16 %v1121, %v1119
        %v1150 = vpack.c.b16 %v1124, %v1122
        %v1151 = vpack.c.b16 %v1125, %v1123
        %v1152 = vpack.c.b16 %v1128, %v1126
        %v1153 = vpack.c.b16 %v1129, %v1127
        %v1154 = vpack.c.b16 %v1132, %v1130
        %v1155 = vpack.c.b16 %v1133, %v1131
        %v1156 = vpack.c.b16 %v1136, %v1134
        %v1157 = vpack.c.b16 %v1137, %v1135
        %v1158 = vpack.c.b16 %v1140, %v1138
        %v1159 = vpack.c.b16 %v1141, %v1139
        %v1160 = vpack.c.b16 %v1144, %v1142
        %v1161 = vpack.c.b16 %v1145, %v1143
        %1178 = vmatprep.subr.bf16.mxu0 %v1147
        %1179 = vmatpush1.bf16.msra.mxu0 %v1146
        %1180 = vmatprep.subr.bf16.mxu0 %v1149
        %1181 = vmatpush1.bf16.msra.mxu0 %v1148
        %1182 = vmatprep.subr.bf16.mxu0 %v1151
        %1183 = vmatpush1.bf16.msra.mxu0 %v1150
        %1184 = vmatprep.subr.bf16.mxu0 %v1153
        %1185 = vmatpush1.bf16.msra.mxu0 %v1152
        %1186 = vmatprep.subr.bf16.mxu0 %v1155
        %1187 = vmatpush1.bf16.msra.mxu0 %v1154
        %1188 = vmatprep.subr.bf16.mxu0 %v1157
        %1189 = vmatpush1.bf16.msra.mxu0 %v1156
        %1190 = vmatprep.subr.bf16.mxu0 %v1159
        %1191 = vmatpush1.bf16.msra.mxu0 %v1158
        %1192 = vmatprep.subr.bf16.mxu0 %v1161
        %1193 = vmatpush1.bf16.msra.mxu0 %v1160
        %1194 = vmatprep.subr.bf16.mxu0 0
        %1195 = vmatpush1.bf16.msra.mxu0 0
        %1196 = vmatprep.subr.bf16.mxu0 0
        %1197 = vmatpush1.bf16.msra.mxu0 0
        %1198 = vmatprep.subr.bf16.mxu0 0
        %1199 = vmatpush1.bf16.msra.mxu0 0
        %1200 = vmatprep.subr.bf16.mxu0 0
        %1201 = vmatpush1.bf16.msra.mxu0 0
        %1202 = vmatprep.subr.bf16.mxu0 0
        %1203 = vmatpush1.bf16.msra.mxu0 0
        %1204 = vmatprep.subr.bf16.mxu0 0
        %1205 = vmatpush1.bf16.msra.mxu0 0
        %1206 = vmatprep.subr.bf16.mxu0 0
        %1207 = vmatpush1.bf16.msra.mxu0 0
        %1208 = vmatprep.subr.bf16.mxu0 0
        %1209 = vmatpush1.bf16.msra.mxu0 0
        %1210 = vmatprep.mubr.bf16.mxu0 0
        %1211 = vmatmul.mubr.bf16.gmra.mrb[0].mxu0 %v1096
        %v1212 = vpop.f32.mrb[0].mxu0
        %v1213 = vadd.f32 0.0, %v1212
        %v1214 = vpop.f32.mrb[0].mxu0
        %v1215 = vadd.f32 0.0, %v1214
        %v1216 = vpop.f32.mrb[0].mxu0
        %v1217 = vadd.f32 0.0, %v1216
        %v1218 = vpop.f32.mrb[0].mxu0
        %v1219 = vadd.f32 0.0, %v1218
        %1220 = vdwg.mxu0
        %v1237 = vunpack.c.l.b16 %v1057
        %v1238 = vunpack.c.h.b16 %v1057
        %v1239 = vunpack.c.l.b16 %v1058
        %v1240 = vunpack.c.h.b16 %v1058
        %v1241 = vunpack.c.l.b16 %v1059
        %v1242 = vunpack.c.h.b16 %v1059
        %v1243 = vunpack.c.l.b16 %v1060
        %v1244 = vunpack.c.h.b16 %v1060
        %v1245 = vunpack.c.l.b16 %v1061
        %v1246 = vunpack.c.h.b16 %v1061
        %v1247 = vunpack.c.l.b16 %v1062
        %v1248 = vunpack.c.h.b16 %v1062
        %v1249 = vunpack.c.l.b16 %v1063
        %v1250 = vunpack.c.h.b16 %v1063
        %v1251 = vunpack.c.l.b16 %v1064
        %v1252 = vunpack.c.h.b16 %v1064
        %v1253 = vunpack.c.l.b16 %v1065
        %v1254 = vunpack.c.h.b16 %v1065
        %v1255 = vunpack.c.l.b16 %v1066
        %v1256 = vunpack.c.h.b16 %v1066
        %v1257 = vunpack.c.l.b16 %v1067
        %v1258 = vunpack.c.h.b16 %v1067
        %v1259 = vunpack.c.l.b16 %v1068
        %v1260 = vunpack.c.h.b16 %v1068
        %v1261 = vunpack.c.l.b16 %v1069
        %v1262 = vunpack.c.h.b16 %v1069
        %v1263 = vunpack.c.l.b16 %v1070
        %v1264 = vunpack.c.h.b16 %v1070
        %v1265 = vunpack.c.l.b16 %v1071
        %v1266 = vunpack.c.h.b16 %v1071
        %v1267 = vunpack.c.l.b16 %v1072
        %v1268 = vunpack.c.h.b16 %v1072
        %v1269 = vpack.c.b16 %v1239, %v1237
        %v1270 = vpack.c.b16 %v1240, %v1238
        %v1271 = vpack.c.b16 %v1243, %v1241
        %v1272 = vpack.c.b16 %v1244, %v1242
        %v1273 = vpack.c.b16 %v1247, %v1245
        %v1274 = vpack.c.b16 %v1248, %v1246
        %v1275 = vpack.c.b16 %v1251, %v1249
        %v1276 = vpack.c.b16 %v1252, %v1250
        %v1277 = vpack.c.b16 %v1255, %v1253
        %v1278 = vpack.c.b16 %v1256, %v1254
        %v1279 = vpack.c.b16 %v1259, %v1257
        %v1280 = vpack.c.b16 %v1260, %v1258
        %v1281 = vpack.c.b16 %v1263, %v1261
        %v1282 = vpack.c.b16 %v1264, %v1262
        %v1283 = vpack.c.b16 %v1267, %v1265
        %v1284 = vpack.c.b16 %v1268, %v1266
        %1301 = vmatprep.subr.bf16.mxu0 %v1270
        %1302 = vmatpush1.bf16.msra.mxu0 %v1269
        %1303 = vmatprep.subr.bf16.mxu0 %v1272
        %1304 = vmatpush1.bf16.msra.mxu0 %v1271
        %1305 = vmatprep.subr.bf16.mxu0 %v1274
        %1306 = vmatpush1.bf16.msra.mxu0 %v1273
        %1307 = vmatprep.subr.bf16.mxu0 %v1276
        %1308 = vmatpush1.bf16.msra.mxu0 %v1275
        %1309 = vmatprep.subr.bf16.mxu0 %v1278
        %1310 = vmatpush1.bf16.msra.mxu0 %v1277
        %1311 = vmatprep.subr.bf16.mxu0 %v1280
        %1312 = vmatpush1.bf16.msra.mxu0 %v1279
        %1313 = vmatprep.subr.bf16.mxu0 %v1282
        %1314 = vmatpush1.bf16.msra.mxu0 %v1281
        %1315 = vmatprep.subr.bf16.mxu0 %v1284
        %1316 = vmatpush1.bf16.msra.mxu0 %v1283
        %1317 = vmatprep.subr.bf16.mxu0 0
        %1318 = vmatpush1.bf16.msra.mxu0 0
        %1319 = vmatprep.subr.bf16.mxu0 0
        %1320 = vmatpush1.bf16.msra.mxu0 0
        %1321 = vmatprep.subr.bf16.mxu0 0
        %1322 = vmatpush1.bf16.msra.mxu0 0
        %1323 = vmatprep.subr.bf16.mxu0 0
        %1324 = vmatpush1.bf16.msra.mxu0 0
        %1325 = vmatprep.subr.bf16.mxu0 0
        %1326 = vmatpush1.bf16.msra.mxu0 0
        %1327 = vmatprep.subr.bf16.mxu0 0
        %1328 = vmatpush1.bf16.msra.mxu0 0
        %1329 = vmatprep.subr.bf16.mxu0 0
        %1330 = vmatpush1.bf16.msra.mxu0 0
        %1331 = vmatprep.subr.bf16.mxu0 0
        %1332 = vmatpush1.bf16.msra.mxu0 0
        %1333 = vmatprep.mubr.bf16.mxu0 0
        %1334 = vmatmul.mubr.bf16.gmra.mrb[0].mxu0 %v1056
        %v1335 = vpop.f32.mrb[0].mxu0
        %v1336 = vadd.f32 %v1213, %v1335
        %v1337 = vpop.f32.mrb[0].mxu0
        %v1338 = vadd.f32 %v1215, %v1337
        %v1339 = vpop.f32.mrb[0].mxu0
        %v1340 = vadd.f32 %v1217, %v1339
        %v1341 = vpop.f32.mrb[0].mxu0
        %v1342 = vadd.f32 %v1219, %v1341
        %1343 = vdwg.mxu0
        %s1344 = scalar_lea.vmem %s3, 256
        %v1345 = vld [vmem:[%s1344] sm:$0xff]
        %v1346 = vld [vmem:[%s1344 + $0x8] sm:$0xff]
        %v1347 = vld [vmem:[%s1344 + $0x10] sm:$0xff]
        %v1348 = vld [vmem:[%s1344 + $0x18] sm:$0xff]
        %v1349 = vld [vmem:[%s1344 + $0x20] sm:$0xff]
        %v1350 = vld [vmem:[%s1344 + $0x28] sm:$0xff]
        %v1351 = vld [vmem:[%s1344 + $0x30] sm:$0xff]
        %v1352 = vld [vmem:[%s1344 + $0x38] sm:$0xff]
        %v1353 = vld [vmem:[%s1344 + $0x40] sm:$0xff]
        %v1354 = vld [vmem:[%s1344 + $0x48] sm:$0xff]
        %v1355 = vld [vmem:[%s1344 + $0x50] sm:$0xff]
        %v1356 = vld [vmem:[%s1344 + $0x58] sm:$0xff]
        %v1357 = vld [vmem:[%s1344 + $0x60] sm:$0xff]
        %v1358 = vld [vmem:[%s1344 + $0x68] sm:$0xff]
        %v1359 = vld [vmem:[%s1344 + $0x70] sm:$0xff]
        %v1360 = vld [vmem:[%s1344 + $0x78] sm:$0xff]
        %v1362 = vrot.slane %v1056, 1
        %v1380 = vunpack.c.l.b16 %v1345
        %v1381 = vunpack.c.h.b16 %v1345
        %v1382 = vunpack.c.l.b16 %v1346
        %v1383 = vunpack.c.h.b16 %v1346
        %v1384 = vunpack.c.l.b16 %v1347
        %v1385 = vunpack.c.h.b16 %v1347
        %v1386 = vunpack.c.l.b16 %v1348
        %v1387 = vunpack.c.h.b16 %v1348
        %v1388 = vunpack.c.l.b16 %v1349
        %v1389 = vunpack.c.h.b16 %v1349
        %v1390 = vunpack.c.l.b16 %v1350
        %v1391 = vunpack.c.h.b16 %v1350
        %v1392 = vunpack.c.l.b16 %v1351
        %v1393 = vunpack.c.h.b16 %v1351
        %v1394 = vunpack.c.l.b16 %v1352
        %v1395 = vunpack.c.h.b16 %v1352
        %v1396 = vunpack.c.l.b16 %v1353
        %v1397 = vunpack.c.h.b16 %v1353
        %v1398 = vunpack.c.l.b16 %v1354
        %v1399 = vunpack.c.h.b16 %v1354
        %v1400 = vunpack.c.l.b16 %v1355
        %v1401 = vunpack.c.h.b16 %v1355
        %v1402 = vunpack.c.l.b16 %v1356
        %v1403 = vunpack.c.h.b16 %v1356
        %v1404 = vunpack.c.l.b16 %v1357
        %v1405 = vunpack.c.h.b16 %v1357
        %v1406 = vunpack.c.l.b16 %v1358
        %v1407 = vunpack.c.h.b16 %v1358
        %v1408 = vunpack.c.l.b16 %v1359
        %v1409 = vunpack.c.h.b16 %v1359
        %v1410 = vunpack.c.l.b16 %v1360
        %v1411 = vunpack.c.h.b16 %v1360
        %v1412 = vpack.c.b16 %v1382, %v1380
        %v1413 = vpack.c.b16 %v1383, %v1381
        %v1414 = vpack.c.b16 %v1386, %v1384
        %v1415 = vpack.c.b16 %v1387, %v1385
        %v1416 = vpack.c.b16 %v1390, %v1388
        %v1417 = vpack.c.b16 %v1391, %v1389
        %v1418 = vpack.c.b16 %v1394, %v1392
        %v1419 = vpack.c.b16 %v1395, %v1393
        %v1420 = vpack.c.b16 %v1398, %v1396
        %v1421 = vpack.c.b16 %v1399, %v1397
        %v1422 = vpack.c.b16 %v1402, %v1400
        %v1423 = vpack.c.b16 %v1403, %v1401
        %v1424 = vpack.c.b16 %v1406, %v1404
        %v1425 = vpack.c.b16 %v1407, %v1405
        %v1426 = vpack.c.b16 %v1410, %v1408
        %v1427 = vpack.c.b16 %v1411, %v1409
        %1444 = vmatprep.subr.bf16.mxu0 %v1413
        %1445 = vmatpush1.bf16.msra.mxu0 %v1412
        %1446 = vmatprep.subr.bf16.mxu0 %v1415
        %1447 = vmatpush1.bf16.msra.mxu0 %v1414
        %1448 = vmatprep.subr.bf16.mxu0 %v1417
        %1449 = vmatpush1.bf16.msra.mxu0 %v1416
        %1450 = vmatprep.subr.bf16.mxu0 %v1419
        %1451 = vmatpush1.bf16.msra.mxu0 %v1418
        %1452 = vmatprep.subr.bf16.mxu0 %v1421
        %1453 = vmatpush1.bf16.msra.mxu0 %v1420
        %1454 = vmatprep.subr.bf16.mxu0 %v1423
        %1455 = vmatpush1.bf16.msra.mxu0 %v1422
        %1456 = vmatprep.subr.bf16.mxu0 %v1425
        %1457 = vmatpush1.bf16.msra.mxu0 %v1424
        %1458 = vmatprep.subr.bf16.mxu0 %v1427
        %1459 = vmatpush1.bf16.msra.mxu0 %v1426
        %1460 = vmatprep.subr.bf16.mxu0 0
        %1461 = vmatpush1.bf16.msra.mxu0 0
        %1462 = vmatprep.subr.bf16.mxu0 0
        %1463 = vmatpush1.bf16.msra.mxu0 0
        %1464 = vmatprep.subr.bf16.mxu0 0
        %1465 = vmatpush1.bf16.msra.mxu0 0
        %1466 = vmatprep.subr.bf16.mxu0 0
        %1467 = vmatpush1.bf16.msra.mxu0 0
        %1468 = vmatprep.subr.bf16.mxu0 0
        %1469 = vmatpush1.bf16.msra.mxu0 0
        %1470 = vmatprep.subr.bf16.mxu0 0
        %1471 = vmatpush1.bf16.msra.mxu0 0
        %1472 = vmatprep.subr.bf16.mxu0 0
        %1473 = vmatpush1.bf16.msra.mxu0 0
        %1474 = vmatprep.subr.bf16.mxu0 0
        %1475 = vmatpush1.bf16.msra.mxu0 0
        %1476 = vmatprep.mubr.bf16.mxu0 0
        %1477 = vmatmul.mubr.bf16.gmra.mrb[0].mxu0 %v1362
        %v1478 = vpop.f32.mrb[0].mxu0
        %v1479 = vadd.f32 0.0, %v1478
        %v1480 = vpop.f32.mrb[0].mxu0
        %v1481 = vadd.f32 0.0, %v1480
        %v1482 = vpop.f32.mrb[0].mxu0
        %v1483 = vadd.f32 0.0, %v1482
        %v1484 = vpop.f32.mrb[0].mxu0
        %v1485 = vadd.f32 0.0, %v1484
        %1486 = vdwg.mxu0
        %v1487 = vadd.f32 %v1336, %v1479
        %v1488 = vadd.f32 %v1338, %v1481
        %v1489 = vadd.f32 %v1340, %v1483
        %v1490 = vadd.f32 %v1342, %v1485
        %s1491 = scalar_lea.vmem %s3, 384
        %v1492 = vld [vmem:[%s1491] sm:$0xff]
        %v1493 = vld [vmem:[%s1491 + $0x8] sm:$0xff]
        %v1494 = vld [vmem:[%s1491 + $0x10] sm:$0xff]
        %v1495 = vld [vmem:[%s1491 + $0x18] sm:$0xff]
        %v1496 = vld [vmem:[%s1491 + $0x20] sm:$0xff]
        %v1497 = vld [vmem:[%s1491 + $0x28] sm:$0xff]
        %v1498 = vld [vmem:[%s1491 + $0x30] sm:$0xff]
        %v1499 = vld [vmem:[%s1491 + $0x38] sm:$0xff]
        %v1500 = vld [vmem:[%s1491 + $0x40] sm:$0xff]
        %v1501 = vld [vmem:[%s1491 + $0x48] sm:$0xff]
        %v1502 = vld [vmem:[%s1491 + $0x50] sm:$0xff]
        %v1503 = vld [vmem:[%s1491 + $0x58] sm:$0xff]
        %v1504 = vld [vmem:[%s1491 + $0x60] sm:$0xff]
        %v1505 = vld [vmem:[%s1491 + $0x68] sm:$0xff]
        %v1506 = vld [vmem:[%s1491 + $0x70] sm:$0xff]
        %v1507 = vld [vmem:[%s1491 + $0x78] sm:$0xff]
        %v1508 = vrot.slane %v1091, 1
        %v1509 = vrot.slane %v1093, 2
        %v1510 = vor.u32 %v1508, %v1509
        %v1528 = vunpack.c.l.b16 %v1492
        %v1529 = vunpack.c.h.b16 %v1492
        %v1530 = vunpack.c.l.b16 %v1493
        %v1531 = vunpack.c.h.b16 %v1493
        %v1532 = vunpack.c.l.b16 %v1494
        %v1533 = vunpack.c.h.b16 %v1494
        %v1534 = vunpack.c.l.b16 %v1495
        %v1535 = vunpack.c.h.b16 %v1495
        %v1536 = vunpack.c.l.b16 %v1496
        %v1537 = vunpack.c.h.b16 %v1496
        %v1538 = vunpack.c.l.b16 %v1497
        %v1539 = vunpack.c.h.b16 %v1497
        %v1540 = vunpack.c.l.b16 %v1498
        %v1541 = vunpack.c.h.b16 %v1498
        %v1542 = vunpack.c.l.b16 %v1499
        %v1543 = vunpack.c.h.b16 %v1499
        %v1544 = vunpack.c.l.b16 %v1500
        %v1545 = vunpack.c.h.b16 %v1500
        %v1546 = vunpack.c.l.b16 %v1501
        %v1547 = vunpack.c.h.b16 %v1501
        %v1548 = vunpack.c.l.b16 %v1502
        %v1549 = vunpack.c.h.b16 %v1502
        %v1550 = vunpack.c.l.b16 %v1503
        %v1551 = vunpack.c.h.b16 %v1503
        %v1552 = vunpack.c.l.b16 %v1504
        %v1553 = vunpack.c.h.b16 %v1504
        %v1554 = vunpack.c.l.b16 %v1505
        %v1555 = vunpack.c.h.b16 %v1505
        %v1556 = vunpack.c.l.b16 %v1506
        %v1557 = vunpack.c.h.b16 %v1506
        %v1558 = vunpack.c.l.b16 %v1507
        %v1559 = vunpack.c.h.b16 %v1507
        %v1560 = vpack.c.b16 %v1530, %v1528
        %v1561 = vpack.c.b16 %v1531, %v1529
        %v1562 = vpack.c.b16 %v1534, %v1532
        %v1563 = vpack.c.b16 %v1535, %v1533
        %v1564 = vpack.c.b16 %v1538, %v1536
        %v1565 = vpack.c.b16 %v1539, %v1537
        %v1566 = vpack.c.b16 %v1542, %v1540
        %v1567 = vpack.c.b16 %v1543, %v1541
        %v1568 = vpack.c.b16 %v1546, %v1544
        %v1569 = vpack.c.b16 %v1547, %v1545
        %v1570 = vpack.c.b16 %v1550, %v1548
        %v1571 = vpack.c.b16 %v1551, %v1549
        %v1572 = vpack.c.b16 %v1554, %v1552
        %v1573 = vpack.c.b16 %v1555, %v1553
        %v1574 = vpack.c.b16 %v1558, %v1556
        %v1575 = vpack.c.b16 %v1559, %v1557
        %1592 = vmatprep.subr.bf16.mxu0 %v1561
        %1593 = vmatpush1.bf16.msra.mxu0 %v1560
        %1594 = vmatprep.subr.bf16.mxu0 %v1563
        %1595 = vmatpush1.bf16.msra.mxu0 %v1562
        %1596 = vmatprep.subr.bf16.mxu0 %v1565
        %1597 = vmatpush1.bf16.msra.mxu0 %v1564
        %1598 = vmatprep.subr.bf16.mxu0 %v1567
        %1599 = vmatpush1.bf16.msra.mxu0 %v1566
        %1600 = vmatprep.subr.bf16.mxu0 %v1569
        %1601 = vmatpush1.bf16.msra.mxu0 %v1568
        %1602 = vmatprep.subr.bf16.mxu0 %v1571
        %1603 = vmatpush1.bf16.msra.mxu0 %v1570
        %1604 = vmatprep.subr.bf16.mxu0 %v1573
        %1605 = vmatpush1.bf16.msra.mxu0 %v1572
        %1606 = vmatprep.subr.bf16.mxu0 %v1575
        %1607 = vmatpush1.bf16.msra.mxu0 %v1574
        %1608 = vmatprep.subr.bf16.mxu0 0
        %1609 = vmatpush1.bf16.msra.mxu0 0
        %1610 = vmatprep.subr.bf16.mxu0 0
        %1611 = vmatpush1.bf16.msra.mxu0 0
        %1612 = vmatprep.subr.bf16.mxu0 0
        %1613 = vmatpush1.bf16.msra.mxu0 0
        %1614 = vmatprep.subr.bf16.mxu0 0
        %1615 = vmatpush1.bf16.msra.mxu0 0
        %1616 = vmatprep.subr.bf16.mxu0 0
        %1617 = vmatpush1.bf16.msra.mxu0 0
        %1618 = vmatprep.subr.bf16.mxu0 0
        %1619 = vmatpush1.bf16.msra.mxu0 0
        %1620 = vmatprep.subr.bf16.mxu0 0
        %1621 = vmatpush1.bf16.msra.mxu0 0
        %1622 = vmatprep.subr.bf16.mxu0 0
        %1623 = vmatpush1.bf16.msra.mxu0 0
        %1624 = vmatprep.mubr.bf16.mxu0 0
        %1625 = vmatmul.mubr.bf16.gmra.mrb[0].mxu0 %v1510
        %v1626 = vpop.f32.mrb[0].mxu0
        %v1627 = vadd.f32 0.0, %v1626
        %v1628 = vpop.f32.mrb[0].mxu0
        %v1629 = vadd.f32 0.0, %v1628
        %v1630 = vpop.f32.mrb[0].mxu0
        %v1631 = vadd.f32 0.0, %v1630
        %v1632 = vpop.f32.mrb[0].mxu0
        %v1633 = vadd.f32 0.0, %v1632
        %1634 = vdwg.mxu0
        %v1635 = vadd.f32 %v1487, %v1627
        %v1636 = vadd.f32 %v1488, %v1629
        %v1637 = vadd.f32 %v1489, %v1631
        %v1638 = vadd.f32 %v1490, %v1633
        %s1639 = scalar_lea.vmem %s3, 512
        %v1640 = vld [vmem:[%s1639] sm:$0xff]
        %v1641 = vld [vmem:[%s1639 + $0x8] sm:$0xff]
        %v1642 = vld [vmem:[%s1639 + $0x10] sm:$0xff]
        %v1643 = vld [vmem:[%s1639 + $0x18] sm:$0xff]
        %v1644 = vld [vmem:[%s1639 + $0x20] sm:$0xff]
        %v1645 = vld [vmem:[%s1639 + $0x28] sm:$0xff]
        %v1646 = vld [vmem:[%s1639 + $0x30] sm:$0xff]
        %v1647 = vld [vmem:[%s1639 + $0x38] sm:$0xff]
        %v1648 = vld [vmem:[%s1639 + $0x40] sm:$0xff]
        %v1649 = vld [vmem:[%s1639 + $0x48] sm:$0xff]
        %v1650 = vld [vmem:[%s1639 + $0x50] sm:$0xff]
        %v1651 = vld [vmem:[%s1639 + $0x58] sm:$0xff]
        %v1652 = vld [vmem:[%s1639 + $0x60] sm:$0xff]
        %v1653 = vld [vmem:[%s1639 + $0x68] sm:$0xff]
        %v1654 = vld [vmem:[%s1639 + $0x70] sm:$0xff]
        %v1655 = vld [vmem:[%s1639 + $0x78] sm:$0xff]
        %v1656 = vrot.slane %v1056, 2
        %v1674 = vunpack.c.l.b16 %v1640
        %v1675 = vunpack.c.h.b16 %v1640
        %v1676 = vunpack.c.l.b16 %v1641
        %v1677 = vunpack.c.h.b16 %v1641
        %v1678 = vunpack.c.l.b16 %v1642
        %v1679 = vunpack.c.h.b16 %v1642
        %v1680 = vunpack.c.l.b16 %v1643
        %v1681 = vunpack.c.h.b16 %v1643
        %v1682 = vunpack.c.l.b16 %v1644
        %v1683 = vunpack.c.h.b16 %v1644
        %v1684 = vunpack.c.l.b16 %v1645
        %v1685 = vunpack.c.h.b16 %v1645
        %v1686 = vunpack.c.l.b16 %v1646
        %v1687 = vunpack.c.h.b16 %v1646
        %v1688 = vunpack.c.l.b16 %v1647
        %v1689 = vunpack.c.h.b16 %v1647
        %v1690 = vunpack.c.l.b16 %v1648
        %v1691 = vunpack.c.h.b16 %v1648
        %v1692 = vunpack.c.l.b16 %v1649
        %v1693 = vunpack.c.h.b16 %v1649
        %v1694 = vunpack.c.l.b16 %v1650
        %v1695 = vunpack.c.h.b16 %v1650
        %v1696 = vunpack.c.l.b16 %v1651
        %v1697 = vunpack.c.h.b16 %v1651
        %v1698 = vunpack.c.l.b16 %v1652
        %v1699 = vunpack.c.h.b16 %v1652
        %v1700 = vunpack.c.l.b16 %v1653
        %v1701 = vunpack.c.h.b16 %v1653
        %v1702 = vunpack.c.l.b16 %v1654
        %v1703 = vunpack.c.h.b16 %v1654
        %v1704 = vunpack.c.l.b16 %v1655
        %v1705 = vunpack.c.h.b16 %v1655
        %v1706 = vpack.c.b16 %v1676, %v1674
        %v1707 = vpack.c.b16 %v1677, %v1675
        %v1708 = vpack.c.b16 %v1680, %v1678
        %v1709 = vpack.c.b16 %v1681, %v1679
        %v1710 = vpack.c.b16 %v1684, %v1682
        %v1711 = vpack.c.b16 %v1685, %v1683
        %v1712 = vpack.c.b16 %v1688, %v1686
        %v1713 = vpack.c.b16 %v1689, %v1687
        %v1714 = vpack.c.b16 %v1692, %v1690
        %v1715 = vpack.c.b16 %v1693, %v1691
        %v1716 = vpack.c.b16 %v1696, %v1694
        %v1717 = vpack.c.b16 %v1697, %v1695
        %v1718 = vpack.c.b16 %v1700, %v1698
        %v1719 = vpack.c.b16 %v1701, %v1699
        %v1720 = vpack.c.b16 %v1704, %v1702
        %v1721 = vpack.c.b16 %v1705, %v1703
        %1738 = vmatprep.subr.bf16.mxu0 %v1707
        %1739 = vmatpush1.bf16.msra.mxu0 %v1706
        %1740 = vmatprep.subr.bf16.mxu0 %v1709
        %1741 = vmatpush1.bf16.msra.mxu0 %v1708
        %1742 = vmatprep.subr.bf16.mxu0 %v1711
        %1743 = vmatpush1.bf16.msra.mxu0 %v1710
        %1744 = vmatprep.subr.bf16.mxu0 %v1713
        %1745 = vmatpush1.bf16.msra.mxu0 %v1712
        %1746 = vmatprep.subr.bf16.mxu0 %v1715
        %1747 = vmatpush1.bf16.msra.mxu0 %v1714
        %1748 = vmatprep.subr.bf16.mxu0 %v1717
        %1749 = vmatpush1.bf16.msra.mxu0 %v1716
        %1750 = vmatprep.subr.bf16.mxu0 %v1719
        %1751 = vmatpush1.bf16.msra.mxu0 %v1718
        %1752 = vmatprep.subr.bf16.mxu0 %v1721
        %1753 = vmatpush1.bf16.msra.mxu0 %v1720
        %1754 = vmatprep.subr.bf16.mxu0 0
        %1755 = vmatpush1.bf16.msra.mxu0 0
        %1756 = vmatprep.subr.bf16.mxu0 0
        %1757 = vmatpush1.bf16.msra.mxu0 0
        %1758 = vmatprep.subr.bf16.mxu0 0
        %1759 = vmatpush1.bf16.msra.mxu0 0
        %1760 = vmatprep.subr.bf16.mxu0 0
        %1761 = vmatpush1.bf16.msra.mxu0 0
        %1762 = vmatprep.subr.bf16.mxu0 0
        %1763 = vmatpush1.bf16.msra.mxu0 0
        %1764 = vmatprep.subr.bf16.mxu0 0
        %1765 = vmatpush1.bf16.msra.mxu0 0
        %1766 = vmatprep.subr.bf16.mxu0 0
        %1767 = vmatpush1.bf16.msra.mxu0 0
        %1768 = vmatprep.subr.bf16.mxu0 0
        %1769 = vmatpush1.bf16.msra.mxu0 0
        %1770 = vmatprep.mubr.bf16.mxu0 0
        %1771 = vmatmul.mubr.bf16.gmra.mrb[0].mxu0 %v1656
        %v1772 = vpop.f32.mrb[0].mxu0
        %v1773 = vadd.f32 0.0, %v1772
        %v1774 = vpop.f32.mrb[0].mxu0
        %v1775 = vadd.f32 0.0, %v1774
        %v1776 = vpop.f32.mrb[0].mxu0
        %v1777 = vadd.f32 0.0, %v1776
        %v1778 = vpop.f32.mrb[0].mxu0
        %v1779 = vadd.f32 0.0, %v1778
        %1780 = vdwg.mxu0
        %v1781 = vadd.f32 %v1635, %v1773
        %v1782 = vadd.f32 %v1636, %v1775
        %v1783 = vadd.f32 %v1637, %v1777
        %v1784 = vadd.f32 %v1638, %v1779
        %v1785 = vld [vmem:[%s4] sm:$0x3]
        %v1787 = vlaneseq
        %v1788 = vshrl.u32 %v1787, 7
        %v1789 = vsub.s32 0, %v1788
        %v1790 = vrot.slane %v1785, %v1789
        %v1791 = vlaneseq
        %v1792 = vshrl.u32 %v1791, 7
        %v1793 = vsub.s32 1, %v1792
        %v1794 = vrot.slane %v1785, %v1793
        %v1797 = vadd.f32 %v1781, %v1790
        %v1798 = vadd.f32 %v1782, %v1794
        %v1799 = vadd.f32 %v1783, %v1790
        %v1800 = vadd.f32 %v1784, %v1794
        %v1801 = vmax.f32 %v1797, 0.0
        %v1802 = vmax.f32 %v1798, 0.0
        %v1803 = vmax.f32 %v1799, 0.0
        %v1804 = vmax.f32 %v1800, 0.0
        %v1805 = vmax.f32 %v1801, %v1802
        %v1806 = vmax.f32 %v1803, %v1804
        %v1807 = vpack.c.bf16 %v1806, %v1805
        %v1808 = vpack.c.bf16 %v949, %v949
        %vm1809 = vcmask 89088
        %v1811 = vsel %vm1809, %v1808, 0
        %vm1813 = vcmask 1044480
        %vm1814 = vcmask 1045504
        %v1815 = vsel %vm1813, 4294967295, 65535
        %v1816 = vsel %vm1814, %v1815, 0
        %v1818 = vand.u32 %v1807, %v1816
        %1820 = vmatprep.subr.bf16.mxu0 0
        %1821 = vmatpush1.bf16.msra.mxu0 %v1818
        %1822 = vmatprep.subr.bf16.mxu0 0
        %1823 = vmatpush1.bf16.msra.mxu0 0
        %1824 = vmatprep.subr.bf16.mxu0 0
        %1825 = vmatpush1.bf16.msra.mxu0 0
        %1826 = vmatprep.subr.bf16.mxu0 0
        %1827 = vmatpush1.bf16.msra.mxu0 0
        %1828 = vmatprep.subr.bf16.mxu0 0
        %1829 = vmatpush1.bf16.msra.mxu0 0
        %1830 = vmatprep.subr.bf16.mxu0 0
        %1831 = vmatpush1.bf16.msra.mxu0 0
        %1832 = vmatprep.subr.bf16.mxu0 0
        %1833 = vmatpush1.bf16.msra.mxu0 0
        %1834 = vmatprep.subr.bf16.mxu0 0
        %1835 = vmatpush1.bf16.msra.mxu0 0
        %1836 = vmatprep.subr.bf16.mxu0 0
        %1837 = vmatpush1.bf16.msra.mxu0 0
        %1838 = vmatprep.subr.bf16.mxu0 0
        %1839 = vmatpush1.bf16.msra.mxu0 0
        %1840 = vmatprep.subr.bf16.mxu0 0
        %1841 = vmatpush1.bf16.msra.mxu0 0
        %1842 = vmatprep.subr.bf16.mxu0 0
        %1843 = vmatpush1.bf16.msra.mxu0 0
        %1844 = vmatprep.subr.bf16.mxu0 0
        %1845 = vmatpush1.bf16.msra.mxu0 0
        %1846 = vmatprep.subr.bf16.mxu0 0
        %1847 = vmatpush1.bf16.msra.mxu0 0
        %1848 = vmatprep.subr.bf16.mxu0 0
        %1849 = vmatpush1.bf16.msra.mxu0 0
        %1850 = vmatprep.subr.bf16.mxu0 0
        %1851 = vmatpush1.bf16.msra.mxu0 0
        %1852 = vmatprep.mubr.bf16.mxu0 0
        %1853 = vmatmul.mubr.bf16.gmra.mrb[0].mxu0 %v1811
        %v1854 = vpop.f32.mrb[0].mxu0
        %v1855 = vadd.f32 0.0, %v1854
        %v1856 = vpop.f32.mrb[0].mxu0
        %v1857 = vpop.f32.mrb[0].mxu0
        %v1858 = vpop.f32.mrb[0].mxu0
        %1859 = vdwg.mxu0
        %v1860 = vpack.c.bf16 %v1007, %v1007
        %v1862 = vsel %vm1809, %v1860, 0
        %1864 = vmatprep.subr.bf16.mxu0 0
        %1865 = vmatpush1.bf16.msra.mxu0 %v1818
        %1866 = vmatprep.subr.bf16.mxu0 0
        %1867 = vmatpush1.bf16.msra.mxu0 0
        %1868 = vmatprep.subr.bf16.mxu0 0
        %1869 = vmatpush1.bf16.msra.mxu0 0
        %1870 = vmatprep.subr.bf16.mxu0 0
        %1871 = vmatpush1.bf16.msra.mxu0 0
        %1872 = vmatprep.subr.bf16.mxu0 0
        %1873 = vmatpush1.bf16.msra.mxu0 0
        %1874 = vmatprep.subr.bf16.mxu0 0
        %1875 = vmatpush1.bf16.msra.mxu0 0
        %1876 = vmatprep.subr.bf16.mxu0 0
        %1877 = vmatpush1.bf16.msra.mxu0 0
        %1878 = vmatprep.subr.bf16.mxu0 0
        %1879 = vmatpush1.bf16.msra.mxu0 0
        %1880 = vmatprep.subr.bf16.mxu0 0
        %1881 = vmatpush1.bf16.msra.mxu0 0
        %1882 = vmatprep.subr.bf16.mxu0 0
        %1883 = vmatpush1.bf16.msra.mxu0 0
        %1884 = vmatprep.subr.bf16.mxu0 0
        %1885 = vmatpush1.bf16.msra.mxu0 0
        %1886 = vmatprep.subr.bf16.mxu0 0
        %1887 = vmatpush1.bf16.msra.mxu0 0
        %1888 = vmatprep.subr.bf16.mxu0 0
        %1889 = vmatpush1.bf16.msra.mxu0 0
        %1890 = vmatprep.subr.bf16.mxu0 0
        %1891 = vmatpush1.bf16.msra.mxu0 0
        %1892 = vmatprep.subr.bf16.mxu0 0
        %1893 = vmatpush1.bf16.msra.mxu0 0
        %1894 = vmatprep.subr.bf16.mxu0 0
        %1895 = vmatpush1.bf16.msra.mxu0 0
        %1896 = vmatprep.mubr.bf16.mxu0 0
        %1897 = vmatmul.mubr.bf16.gmra.mrb[0].mxu0 %v1862
        %v1898 = vpop.f32.mrb[0].mxu0
        %v1899 = vadd.f32 0.0, %v1898
        %v1900 = vpop.f32.mrb[0].mxu0
        %v1901 = vpop.f32.mrb[0].mxu0
        %v1902 = vpop.f32.mrb[0].mxu0
        %1903 = vdwg.mxu0
        %v1904 = vmax.f32 %v1855, %v1899
        %v1905 = vpack.c.bf16 %v1904, %v1904
        %v1906 = vld [vmem:[#allocation5] sm:$0xf]
        %v1907 = vld [vmem:[#allocation5 + $0x4] sm:$0xf]
        %v1908 = vld [vmem:[#allocation5 + $0x8] sm:$0xf]
        %v1909 = vld [vmem:[#allocation5 + $0xc] sm:$0xf]
        %v1910 = vld [vmem:[#allocation5 + $0x10] sm:$0xf]
        %v1911 = vld [vmem:[#allocation5 + $0x14] sm:$0xf]
        %v1912 = vld [vmem:[#allocation5 + $0x18] sm:$0xf]
        %v1913 = vld [vmem:[#allocation5 + $0x1c] sm:$0xf]
        %v1914 = vld [vmem:[#allocation5 + $0x20] sm:$0xf]
        %v1915 = vld [vmem:[#allocation5 + $0x24] sm:$0xf]
        %v1916 = vld [vmem:[#allocation5 + $0x28] sm:$0xf]
        %v1917 = vld [vmem:[#allocation5 + $0x2c] sm:$0xf]
        %v1918 = vld [vmem:[#allocation5 + $0x30] sm:$0xf]
        %v1919 = vld [vmem:[#allocation5 + $0x34] sm:$0xf]
        %v1920 = vld [vmem:[#allocation5 + $0x38] sm:$0xf]
        %v1921 = vld [vmem:[#allocation5 + $0x3c] sm:$0xf]
        %s1922 = scalar_lea.vmem [#allocation5], 64
        %v1923 = vld [vmem:[%s1922] sm:$0xf]
        %v1924 = vld [vmem:[%s1922 + $0x4] sm:$0xf]
        %v1925 = vld [vmem:[%s1922 + $0x8] sm:$0xf]
        %v1926 = vld [vmem:[%s1922 + $0xc] sm:$0xf]
        %v1927 = vld [vmem:[%s1922 + $0x10] sm:$0xf]
        %v1928 = vld [vmem:[%s1922 + $0x14] sm:$0xf]
        %v1929 = vld [vmem:[%s1922 + $0x18] sm:$0xf]
        %v1930 = vld [vmem:[%s1922 + $0x1c] sm:$0xf]
        %v1931 = vld [vmem:[%s1922 + $0x20] sm:$0xf]
        %v1932 = vld [vmem:[%s1922 + $0x24] sm:$0xf]
        %v1933 = vld [vmem:[%s1922 + $0x28] sm:$0xf]
        %v1934 = vld [vmem:[%s1922 + $0x2c] sm:$0xf]
        %v1935 = vld [vmem:[%s1922 + $0x30] sm:$0xf]
        %v1936 = vld [vmem:[%s1922 + $0x34] sm:$0xf]
        %v1937 = vld [vmem:[%s1922 + $0x38] sm:$0xf]
        %v1938 = vld [vmem:[%s1922 + $0x3c] sm:$0xf]
        %v1940 = vshrl.u32 %v1905, 16
        %v1959 = vunpack.c.l.b16 %v1923
        %v1960 = vunpack.c.l.b16 %v1924
        %v1961 = vunpack.c.l.b16 %v1925
        %v1962 = vunpack.c.l.b16 %v1926
        %v1963 = vunpack.c.l.b16 %v1927
        %v1964 = vunpack.c.l.b16 %v1928
        %v1965 = vunpack.c.l.b16 %v1929
        %v1966 = vunpack.c.l.b16 %v1930
        %v1967 = vunpack.c.l.b16 %v1931
        %v1968 = vunpack.c.l.b16 %v1932
        %v1969 = vunpack.c.l.b16 %v1933
        %v1970 = vunpack.c.l.b16 %v1934
        %v1971 = vunpack.c.l.b16 %v1935
        %v1972 = vunpack.c.l.b16 %v1936
        %v1973 = vunpack.c.l.b16 %v1937
        %v1974 = vunpack.c.l.b16 %v1938
        %v1975 = vpack.c.b16 %v1960, %v1959
        %v1976 = vpack.c.b16 %v1962, %v1961
        %v1977 = vpack.c.b16 %v1964, %v1963
        %v1978 = vpack.c.b16 %v1966, %v1965
        %v1979 = vpack.c.b16 %v1968, %v1967
        %v1980 = vpack.c.b16 %v1970, %v1969
        %v1981 = vpack.c.b16 %v1972, %v1971
        %v1982 = vpack.c.b16 %v1974, %v1973
        %1991 = vmatprep.subr.bf16.mxu0 0
        %1992 = vmatpush1.bf16.msra.mxu0 %v1975
        %1993 = vmatprep.subr.bf16.mxu0 0
        %1994 = vmatpush1.bf16.msra.mxu0 %v1976
        %1995 = vmatprep.subr.bf16.mxu0 0
        %1996 = vmatpush1.bf16.msra.mxu0 %v1977
        %1997 = vmatprep.subr.bf16.mxu0 0
        %1998 = vmatpush1.bf16.msra.mxu0 %v1978
        %1999 = vmatprep.subr.bf16.mxu0 0
        %2000 = vmatpush1.bf16.msra.mxu0 %v1979
        %2001 = vmatprep.subr.bf16.mxu0 0
        %2002 = vmatpush1.bf16.msra.mxu0 %v1980
        %2003 = vmatprep.subr.bf16.mxu0 0
        %2004 = vmatpush1.bf16.msra.mxu0 %v1981
        %2005 = vmatprep.subr.bf16.mxu0 0
        %2006 = vmatpush1.bf16.msra.mxu0 %v1982
        %2007 = vmatprep.subr.bf16.mxu0 0
        %2008 = vmatpush1.bf16.msra.mxu0 0
        %2009 = vmatprep.subr.bf16.mxu0 0
        %2010 = vmatpush1.bf16.msra.mxu0 0
        %2011 = vmatprep.subr.bf16.mxu0 0
        %2012 = vmatpush1.bf16.msra.mxu0 0
        %2013 = vmatprep.subr.bf16.mxu0 0
        %2014 = vmatpush1.bf16.msra.mxu0 0
        %2015 = vmatprep.subr.bf16.mxu0 0
        %2016 = vmatpush1.bf16.msra.mxu0 0
        %2017 = vmatprep.subr.bf16.mxu0 0
        %2018 = vmatpush1.bf16.msra.mxu0 0
        %2019 = vmatprep.subr.bf16.mxu0 0
        %2020 = vmatpush1.bf16.msra.mxu0 0
        %2021 = vmatprep.subr.bf16.mxu0 0
        %2022 = vmatpush1.bf16.msra.mxu0 0
        %2023 = vmatprep.mubr.bf16.mxu0 0
        %2024 = vmatmul.mubr.bf16.gmra.mrb[0].mxu0 %v1940
        %v2025 = vpop.f32.mrb[0].mxu0
        %v2026 = vadd.f32 0.0, %v2025
        %v2027 = vpop.f32.mrb[0].mxu0
        %v2028 = vpop.f32.mrb[0].mxu0
        %v2029 = vpop.f32.mrb[0].mxu0
        %2030 = vdwg.mxu0
        %v2047 = vunpack.c.l.b16 %v1906
        %v2048 = vunpack.c.l.b16 %v1907
        %v2049 = vunpack.c.l.b16 %v1908
        %v2050 = vunpack.c.l.b16 %v1909
        %v2051 = vunpack.c.l.b16 %v1910
        %v2052 = vunpack.c.l.b16 %v1911
        %v2053 = vunpack.c.l.b16 %v1912
        %v2054 = vunpack.c.l.b16 %v1913
        %v2055 = vunpack.c.l.b16 %v1914
        %v2056 = vunpack.c.l.b16 %v1915
        %v2057 = vunpack.c.l.b16 %v1916
        %v2058 = vunpack.c.l.b16 %v1917
        %v2059 = vunpack.c.l.b16 %v1918
        %v2060 = vunpack.c.l.b16 %v1919
        %v2061 = vunpack.c.l.b16 %v1920
        %v2062 = vunpack.c.l.b16 %v1921
        %v2063 = vpack.c.b16 %v2048, %v2047
        %v2064 = vpack.c.b16 %v2050, %v2049
        %v2065 = vpack.c.b16 %v2052, %v2051
        %v2066 = vpack.c.b16 %v2054, %v2053
        %v2067 = vpack.c.b16 %v2056, %v2055
        %v2068 = vpack.c.b16 %v2058, %v2057
        %v2069 = vpack.c.b16 %v2060, %v2059
        %v2070 = vpack.c.b16 %v2062, %v2061
        %2079 = vmatprep.subr.bf16.mxu0 0
        %2080 = vmatpush1.bf16.msra.mxu0 %v2063
        %2081 = vmatprep.subr.bf16.mxu0 0
        %2082 = vmatpush1.bf16.msra.mxu0 %v2064
        %2083 = vmatprep.subr.bf16.mxu0 0
        %2084 = vmatpush1.bf16.msra.mxu0 %v2065
        %2085 = vmatprep.subr.bf16.mxu0 0
        %2086 = vmatpush1.bf16.msra.mxu0 %v2066
        %2087 = vmatprep.subr.bf16.mxu0 0
        %2088 = vmatpush1.bf16.msra.mxu0 %v2067
        %2089 = vmatprep.subr.bf16.mxu0 0
        %2090 = vmatpush1.bf16.msra.mxu0 %v2068
        %2091 = vmatprep.subr.bf16.mxu0 0
        %2092 = vmatpush1.bf16.msra.mxu0 %v2069
        %2093 = vmatprep.subr.bf16.mxu0 0
        %2094 = vmatpush1.bf16.msra.mxu0 %v2070
        %2095 = vmatprep.subr.bf16.mxu0 0
        %2096 = vmatpush1.bf16.msra.mxu0 0
        %2097 = vmatprep.subr.bf16.mxu0 0
        %2098 = vmatpush1.bf16.msra.mxu0 0
        %2099 = vmatprep.subr.bf16.mxu0 0
        %2100 = vmatpush1.bf16.msra.mxu0 0
        %2101 = vmatprep.subr.bf16.mxu0 0
        %2102 = vmatpush1.bf16.msra.mxu0 0
        %2103 = vmatprep.subr.bf16.mxu0 0
        %2104 = vmatpush1.bf16.msra.mxu0 0
        %2105 = vmatprep.subr.bf16.mxu0 0
        %2106 = vmatpush1.bf16.msra.mxu0 0
        %2107 = vmatprep.subr.bf16.mxu0 0
        %2108 = vmatpush1.bf16.msra.mxu0 0
        %2109 = vmatprep.subr.bf16.mxu0 0
        %2110 = vmatpush1.bf16.msra.mxu0 0
        %2111 = vmatprep.mubr.bf16.mxu0 0
        %2112 = vmatmul.mubr.bf16.gmra.mrb[0].mxu0 %v1905
        %v2113 = vpop.f32.mrb[0].mxu0
        %v2114 = vadd.f32 %v2026, %v2113
        %v2115 = vpop.f32.mrb[0].mxu0
        %v2116 = vpop.f32.mrb[0].mxu0
        %v2117 = vpop.f32.mrb[0].mxu0
        %2118 = vdwg.mxu0
        %s2119 = scalar_lea.vmem [#allocation5], 128
        %v2120 = vld [vmem:[%s2119] sm:$0xf]
        %v2121 = vld [vmem:[%s2119 + $0x4] sm:$0xf]
        %v2122 = vld [vmem:[%s2119 + $0x8] sm:$0xf]
        %v2123 = vld [vmem:[%s2119 + $0xc] sm:$0xf]
        %v2124 = vld [vmem:[%s2119 + $0x10] sm:$0xf]
        %v2125 = vld [vmem:[%s2119 + $0x14] sm:$0xf]
        %v2126 = vld [vmem:[%s2119 + $0x18] sm:$0xf]
        %v2127 = vld [vmem:[%s2119 + $0x1c] sm:$0xf]
        %v2128 = vld [vmem:[%s2119 + $0x20] sm:$0xf]
        %v2129 = vld [vmem:[%s2119 + $0x24] sm:$0xf]
        %v2130 = vld [vmem:[%s2119 + $0x28] sm:$0xf]
        %v2131 = vld [vmem:[%s2119 + $0x2c] sm:$0xf]
        %v2132 = vld [vmem:[%s2119 + $0x30] sm:$0xf]
        %v2133 = vld [vmem:[%s2119 + $0x34] sm:$0xf]
        %v2134 = vld [vmem:[%s2119 + $0x38] sm:$0xf]
        %v2135 = vld [vmem:[%s2119 + $0x3c] sm:$0xf]
        %v2137 = vrot.slane %v1905, 1
        %v2155 = vunpack.c.l.b16 %v2120
        %v2156 = vunpack.c.l.b16 %v2121
        %v2157 = vunpack.c.l.b16 %v2122
        %v2158 = vunpack.c.l.b16 %v2123
        %v2159 = vunpack.c.l.b16 %v2124
        %v2160 = vunpack.c.l.b16 %v2125
        %v2161 = vunpack.c.l.b16 %v2126
        %v2162 = vunpack.c.l.b16 %v2127
        %v2163 = vunpack.c.l.b16 %v2128
        %v2164 = vunpack.c.l.b16 %v2129
        %v2165 = vunpack.c.l.b16 %v2130
        %v2166 = vunpack.c.l.b16 %v2131
        %v2167 = vunpack.c.l.b16 %v2132
        %v2168 = vunpack.c.l.b16 %v2133
        %v2169 = vunpack.c.l.b16 %v2134
        %v2170 = vunpack.c.l.b16 %v2135
        %v2171 = vpack.c.b16 %v2156, %v2155
        %v2172 = vpack.c.b16 %v2158, %v2157
        %v2173 = vpack.c.b16 %v2160, %v2159
        %v2174 = vpack.c.b16 %v2162, %v2161
        %v2175 = vpack.c.b16 %v2164, %v2163
        %v2176 = vpack.c.b16 %v2166, %v2165
        %v2177 = vpack.c.b16 %v2168, %v2167
        %v2178 = vpack.c.b16 %v2170, %v2169
        %2187 = vmatprep.subr.bf16.mxu0 0
        %2188 = vmatpush1.bf16.msra.mxu0 %v2171
        %2189 = vmatprep.subr.bf16.mxu0 0
        %2190 = vmatpush1.bf16.msra.mxu0 %v2172
        %2191 = vmatprep.subr.bf16.mxu0 0
        %2192 = vmatpush1.bf16.msra.mxu0 %v2173
        %2193 = vmatprep.subr.bf16.mxu0 0
        %2194 = vmatpush1.bf16.msra.mxu0 %v2174
        %2195 = vmatprep.subr.bf16.mxu0 0
        %2196 = vmatpush1.bf16.msra.mxu0 %v2175
        %2197 = vmatprep.subr.bf16.mxu0 0
        %2198 = vmatpush1.bf16.msra.mxu0 %v2176
        %2199 = vmatprep.subr.bf16.mxu0 0
        %2200 = vmatpush1.bf16.msra.mxu0 %v2177
        %2201 = vmatprep.subr.bf16.mxu0 0
        %2202 = vmatpush1.bf16.msra.mxu0 %v2178
        %2203 = vmatprep.subr.bf16.mxu0 0
        %2204 = vmatpush1.bf16.msra.mxu0 0
        %2205 = vmatprep.subr.bf16.mxu0 0
        %2206 = vmatpush1.bf16.msra.mxu0 0
        %2207 = vmatprep.subr.bf16.mxu0 0
        %2208 = vmatpush1.bf16.msra.mxu0 0
        %2209 = vmatprep.subr.bf16.mxu0 0
        %2210 = vmatpush1.bf16.msra.mxu0 0
        %2211 = vmatprep.subr.bf16.mxu0 0
        %2212 = vmatpush1.bf16.msra.mxu0 0
        %2213 = vmatprep.subr.bf16.mxu0 0
        %2214 = vmatpush1.bf16.msra.mxu0 0
        %2215 = vmatprep.subr.bf16.mxu0 0
        %2216 = vmatpush1.bf16.msra.mxu0 0
        %2217 = vmatprep.subr.bf16.mxu0 0
        %2218 = vmatpush1.bf16.msra.mxu0 0
        %2219 = vmatprep.mubr.bf16.mxu0 0
        %2220 = vmatmul.mubr.bf16.gmra.mrb[0].mxu0 %v2137
        %v2221 = vpop.f32.mrb[0].mxu0
        %v2222 = vadd.f32 0.0, %v2221
        %v2223 = vpop.f32.mrb[0].mxu0
        %v2224 = vpop.f32.mrb[0].mxu0
        %v2225 = vpop.f32.mrb[0].mxu0
        %2226 = vdwg.mxu0
        %v2227 = vadd.f32 %v2114, %v2222
        %s2228 = scalar_lea.vmem [#allocation5], 192
        %v2229 = vld [vmem:[%s2228] sm:$0xf]
        %v2230 = vld [vmem:[%s2228 + $0x4] sm:$0xf]
        %v2231 = vld [vmem:[%s2228 + $0x8] sm:$0xf]
        %v2232 = vld [vmem:[%s2228 + $0xc] sm:$0xf]
        %v2233 = vld [vmem:[%s2228 + $0x10] sm:$0xf]
        %v2234 = vld [vmem:[%s2228 + $0x14] sm:$0xf]
        %v2235 = vld [vmem:[%s2228 + $0x18] sm:$0xf]
        %v2236 = vld [vmem:[%s2228 + $0x1c] sm:$0xf]
        %v2237 = vld [vmem:[%s2228 + $0x20] sm:$0xf]
        %v2238 = vld [vmem:[%s2228 + $0x24] sm:$0xf]
        %v2239 = vld [vmem:[%s2228 + $0x28] sm:$0xf]
        %v2240 = vld [vmem:[%s2228 + $0x2c] sm:$0xf]
        %v2241 = vld [vmem:[%s2228 + $0x30] sm:$0xf]
        %v2242 = vld [vmem:[%s2228 + $0x34] sm:$0xf]
        %v2243 = vld [vmem:[%s2228 + $0x38] sm:$0xf]
        %v2244 = vld [vmem:[%s2228 + $0x3c] sm:$0xf]
        %v2245 = vrot.slane %v1940, 1
        %v2263 = vunpack.c.l.b16 %v2229
        %v2264 = vunpack.c.l.b16 %v2230
        %v2265 = vunpack.c.l.b16 %v2231
        %v2266 = vunpack.c.l.b16 %v2232
        %v2267 = vunpack.c.l.b16 %v2233
        %v2268 = vunpack.c.l.b16 %v2234
        %v2269 = vunpack.c.l.b16 %v2235
        %v2270 = vunpack.c.l.b16 %v2236
        %v2271 = vunpack.c.l.b16 %v2237
        %v2272 = vunpack.c.l.b16 %v2238
        %v2273 = vunpack.c.l.b16 %v2239
        %v2274 = vunpack.c.l.b16 %v2240
        %v2275 = vunpack.c.l.b16 %v2241
        %v2276 = vunpack.c.l.b16 %v2242
        %v2277 = vunpack.c.l.b16 %v2243
        %v2278 = vunpack.c.l.b16 %v2244
        %v2279 = vpack.c.b16 %v2264, %v2263
        %v2280 = vpack.c.b16 %v2266, %v2265
        %v2281 = vpack.c.b16 %v2268, %v2267
        %v2282 = vpack.c.b16 %v2270, %v2269
        %v2283 = vpack.c.b16 %v2272, %v2271
        %v2284 = vpack.c.b16 %v2274, %v2273
        %v2285 = vpack.c.b16 %v2276, %v2275
        %v2286 = vpack.c.b16 %v2278, %v2277
        %2295 = vmatprep.subr.bf16.mxu0 0
        %2296 = vmatpush1.bf16.msra.mxu0 %v2279
        %2297 = vmatprep.subr.bf16.mxu0 0
        %2298 = vmatpush1.bf16.msra.mxu0 %v2280
        %2299 = vmatprep.subr.bf16.mxu0 0
        %2300 = vmatpush1.bf16.msra.mxu0 %v2281
        %2301 = vmatprep.subr.bf16.mxu0 0
        %2302 = vmatpush1.bf16.msra.mxu0 %v2282
        %2303 = vmatprep.subr.bf16.mxu0 0
        %2304 = vmatpush1.bf16.msra.mxu0 %v2283
        %2305 = vmatprep.subr.bf16.mxu0 0
        %2306 = vmatpush1.bf16.msra.mxu0 %v2284
        %2307 = vmatprep.subr.bf16.mxu0 0
        %2308 = vmatpush1.bf16.msra.mxu0 %v2285
        %2309 = vmatprep.subr.bf16.mxu0 0
        %2310 = vmatpush1.bf16.msra.mxu0 %v2286
        %2311 = vmatprep.subr.bf16.mxu0 0
        %2312 = vmatpush1.bf16.msra.mxu0 0
        %2313 = vmatprep.subr.bf16.mxu0 0
        %2314 = vmatpush1.bf16.msra.mxu0 0
        %2315 = vmatprep.subr.bf16.mxu0 0
        %2316 = vmatpush1.bf16.msra.mxu0 0
        %2317 = vmatprep.subr.bf16.mxu0 0
        %2318 = vmatpush1.bf16.msra.mxu0 0
        %2319 = vmatprep.subr.bf16.mxu0 0
        %2320 = vmatpush1.bf16.msra.mxu0 0
        %2321 = vmatprep.subr.bf16.mxu0 0
        %2322 = vmatpush1.bf16.msra.mxu0 0
        %2323 = vmatprep.subr.bf16.mxu0 0
        %2324 = vmatpush1.bf16.msra.mxu0 0
        %2325 = vmatprep.subr.bf16.mxu0 0
        %2326 = vmatpush1.bf16.msra.mxu0 0
        %2327 = vmatprep.mubr.bf16.mxu0 0
        %2328 = vmatmul.mubr.bf16.gmra.mrb[0].mxu0 %v2245
        %v2329 = vpop.f32.mrb[0].mxu0
        %v2330 = vadd.f32 0.0, %v2329
        %v2331 = vpop.f32.mrb[0].mxu0
        %v2332 = vpop.f32.mrb[0].mxu0
        %v2333 = vpop.f32.mrb[0].mxu0
        %2334 = vdwg.mxu0
        %v2335 = vadd.f32 %v2227, %v2330
        %s2336 = scalar_lea.vmem [#allocation5], 256
        %v2337 = vld [vmem:[%s2336] sm:$0xf]
        %v2338 = vld [vmem:[%s2336 + $0x4] sm:$0xf]
        %v2339 = vld [vmem:[%s2336 + $0x8] sm:$0xf]
        %v2340 = vld [vmem:[%s2336 + $0xc] sm:$0xf]
        %v2341 = vld [vmem:[%s2336 + $0x10] sm:$0xf]
        %v2342 = vld [vmem:[%s2336 + $0x14] sm:$0xf]
        %v2343 = vld [vmem:[%s2336 + $0x18] sm:$0xf]
        %v2344 = vld [vmem:[%s2336 + $0x1c] sm:$0xf]
        %v2345 = vld [vmem:[%s2336 + $0x20] sm:$0xf]
        %v2346 = vld [vmem:[%s2336 + $0x24] sm:$0xf]
        %v2347 = vld [vmem:[%s2336 + $0x28] sm:$0xf]
        %v2348 = vld [vmem:[%s2336 + $0x2c] sm:$0xf]
        %v2349 = vld [vmem:[%s2336 + $0x30] sm:$0xf]
        %v2350 = vld [vmem:[%s2336 + $0x34] sm:$0xf]
        %v2351 = vld [vmem:[%s2336 + $0x38] sm:$0xf]
        %v2352 = vld [vmem:[%s2336 + $0x3c] sm:$0xf]
        %v2353 = vrot.slane %v1905, 2
        %v2371 = vunpack.c.l.b16 %v2337
        %v2372 = vunpack.c.l.b16 %v2338
        %v2373 = vunpack.c.l.b16 %v2339
        %v2374 = vunpack.c.l.b16 %v2340
        %v2375 = vunpack.c.l.b16 %v2341
        %v2376 = vunpack.c.l.b16 %v2342
        %v2377 = vunpack.c.l.b16 %v2343
        %v2378 = vunpack.c.l.b16 %v2344
        %v2379 = vunpack.c.l.b16 %v2345
        %v2380 = vunpack.c.l.b16 %v2346
        %v2381 = vunpack.c.l.b16 %v2347
        %v2382 = vunpack.c.l.b16 %v2348
        %v2383 = vunpack.c.l.b16 %v2349
        %v2384 = vunpack.c.l.b16 %v2350
        %v2385 = vunpack.c.l.b16 %v2351
        %v2386 = vunpack.c.l.b16 %v2352
        %v2387 = vpack.c.b16 %v2372, %v2371
        %v2388 = vpack.c.b16 %v2374, %v2373
        %v2389 = vpack.c.b16 %v2376, %v2375
        %v2390 = vpack.c.b16 %v2378, %v2377
        %v2391 = vpack.c.b16 %v2380, %v2379
        %v2392 = vpack.c.b16 %v2382, %v2381
        %v2393 = vpack.c.b16 %v2384, %v2383
        %v2394 = vpack.c.b16 %v2386, %v2385
        %2403 = vmatprep.subr.bf16.mxu0 0
        %2404 = vmatpush1.bf16.msra.mxu0 %v2387
        %2405 = vmatprep.subr.bf16.mxu0 0
        %2406 = vmatpush1.bf16.msra.mxu0 %v2388
        %2407 = vmatprep.subr.bf16.mxu0 0
        %2408 = vmatpush1.bf16.msra.mxu0 %v2389
        %2409 = vmatprep.subr.bf16.mxu0 0
        %2410 = vmatpush1.bf16.msra.mxu0 %v2390
        %2411 = vmatprep.subr.bf16.mxu0 0
        %2412 = vmatpush1.bf16.msra.mxu0 %v2391
        %2413 = vmatprep.subr.bf16.mxu0 0
        %2414 = vmatpush1.bf16.msra.mxu0 %v2392
        %2415 = vmatprep.subr.bf16.mxu0 0
        %2416 = vmatpush1.bf16.msra.mxu0 %v2393
        %2417 = vmatprep.subr.bf16.mxu0 0
        %2418 = vmatpush1.bf16.msra.mxu0 %v2394
        %2419 = vmatprep.subr.bf16.mxu0 0
        %2420 = vmatpush1.bf16.msra.mxu0 0
        %2421 = vmatprep.subr.bf16.mxu0 0
        %2422 = vmatpush1.bf16.msra.mxu0 0
        %2423 = vmatprep.subr.bf16.mxu0 0
        %2424 = vmatpush1.bf16.msra.mxu0 0
        %2425 = vmatprep.subr.bf16.mxu0 0
        %2426 = vmatpush1.bf16.msra.mxu0 0
        %2427 = vmatprep.subr.bf16.mxu0 0
        %2428 = vmatpush1.bf16.msra.mxu0 0
        %2429 = vmatprep.subr.bf16.mxu0 0
        %2430 = vmatpush1.bf16.msra.mxu0 0
        %2431 = vmatprep.subr.bf16.mxu0 0
        %2432 = vmatpush1.bf16.msra.mxu0 0
        %2433 = vmatprep.subr.bf16.mxu0 0
        %2434 = vmatpush1.bf16.msra.mxu0 0
        %2435 = vmatprep.mubr.bf16.mxu0 0
        %2436 = vmatmul.mubr.bf16.gmra.mrb[0].mxu0 %v2353
        %v2437 = vpop.f32.mrb[0].mxu0
        %v2438 = vadd.f32 0.0, %v2437
        %v2439 = vpop.f32.mrb[0].mxu0
        %v2440 = vpop.f32.mrb[0].mxu0
        %v2441 = vpop.f32.mrb[0].mxu0
        %2442 = vdwg.mxu0
        %v2443 = vadd.f32 %v2335, %v2438
        %v2444 = vld [vmem:[%s6] sm:$0x1]
        %v2445 = vadd.f32 %v2443, %v2444
        %v2446 = vmax.f32 %v2445, 0.0
        %v2447 = vpack.c.bf16 %v2446, %v2446
        %v2448 = vld [vmem:[%s7] sm:$0xf]
        %v2449 = vld [vmem:[%s7 + $0x4] sm:$0xf]
        %v2450 = vld [vmem:[%s7 + $0x8] sm:$0xf]
        %v2451 = vld [vmem:[%s7 + $0xc] sm:$0xf]
        %v2452 = vld [vmem:[%s7 + $0x10] sm:$0xf]
        %v2453 = vld [vmem:[%s7 + $0x14] sm:$0xf]
        %v2454 = vld [vmem:[%s7 + $0x18] sm:$0xf]
        %v2455 = vld [vmem:[%s7 + $0x1c] sm:$0xf]
        %v2456 = vld [vmem:[%s7 + $0x20] sm:$0xf]
        %v2457 = vld [vmem:[%s7 + $0x24] sm:$0xf]
        %v2458 = vld [vmem:[%s7 + $0x28] sm:$0xf]
        %v2459 = vld [vmem:[%s7 + $0x2c] sm:$0xf]
        %v2460 = vld [vmem:[%s7 + $0x30] sm:$0xf]
        %v2461 = vld [vmem:[%s7 + $0x34] sm:$0xf]
        %v2462 = vld [vmem:[%s7 + $0x38] sm:$0xf]
        %v2463 = vld [vmem:[%s7 + $0x3c] sm:$0xf]
        %v2464 = vld [vmem:[%s8] sm:$0x1]
        %v2481 = vunpack.c.l.b16 %v2448
        %v2482 = vunpack.c.l.b16 %v2449
        %v2483 = vunpack.c.l.b16 %v2450
        %v2484 = vunpack.c.l.b16 %v2451
        %v2485 = vunpack.c.l.b16 %v2452
        %v2486 = vunpack.c.l.b16 %v2453
        %v2487 = vunpack.c.l.b16 %v2454
        %v2488 = vunpack.c.l.b16 %v2455
        %v2489 = vunpack.c.l.b16 %v2456
        %v2490 = vunpack.c.l.b16 %v2457
        %v2491 = vunpack.c.l.b16 %v2458
        %v2492 = vunpack.c.l.b16 %v2459
        %v2493 = vunpack.c.l.b16 %v2460
        %v2494 = vunpack.c.l.b16 %v2461
        %v2495 = vunpack.c.l.b16 %v2462
        %v2496 = vunpack.c.l.b16 %v2463
        %v2497 = vpack.c.b16 %v2482, %v2481
        %v2498 = vpack.c.b16 %v2484, %v2483
        %v2499 = vpack.c.b16 %v2486, %v2485
        %v2500 = vpack.c.b16 %v2488, %v2487
        %v2501 = vpack.c.b16 %v2490, %v2489
        %v2502 = vpack.c.b16 %v2492, %v2491
        %v2503 = vpack.c.b16 %v2494, %v2493
        %v2504 = vpack.c.b16 %v2496, %v2495
        %2513 = vmatprep.subr.bf16.mxu0 0
        %2514 = vmatpush1.bf16.msra.mxu0 %v2497
        %2515 = vmatprep.subr.bf16.mxu0 0
        %2516 = vmatpush1.bf16.msra.mxu0 %v2498
        %2517 = vmatprep.subr.bf16.mxu0 0
        %2518 = vmatpush1.bf16.msra.mxu0 %v2499
        %2519 = vmatprep.subr.bf16.mxu0 0
        %2520 = vmatpush1.bf16.msra.mxu0 %v2500
        %2521 = vmatprep.subr.bf16.mxu0 0
        %2522 = vmatpush1.bf16.msra.mxu0 %v2501
        %2523 = vmatprep.subr.bf16.mxu0 0
        %2524 = vmatpush1.bf16.msra.mxu0 %v2502
        %2525 = vmatprep.subr.bf16.mxu0 0
        %2526 = vmatpush1.bf16.msra.mxu0 %v2503
        %2527 = vmatprep.subr.bf16.mxu0 0
        %2528 = vmatpush1.bf16.msra.mxu0 %v2504
        %2529 = vmatprep.subr.bf16.mxu0 0
        %2530 = vmatpush1.bf16.msra.mxu0 0
        %2531 = vmatprep.subr.bf16.mxu0 0
        %2532 = vmatpush1.bf16.msra.mxu0 0
        %2533 = vmatprep.subr.bf16.mxu0 0
        %2534 = vmatpush1.bf16.msra.mxu0 0
        %2535 = vmatprep.subr.bf16.mxu0 0
        %2536 = vmatpush1.bf16.msra.mxu0 0
        %2537 = vmatprep.subr.bf16.mxu0 0
        %2538 = vmatpush1.bf16.msra.mxu0 0
        %2539 = vmatprep.subr.bf16.mxu0 0
        %2540 = vmatpush1.bf16.msra.mxu0 0
        %2541 = vmatprep.subr.bf16.mxu0 0
        %2542 = vmatpush1.bf16.msra.mxu0 0
        %2543 = vmatprep.subr.bf16.mxu0 0
        %2544 = vmatpush1.bf16.msra.mxu0 0
        %2545 = vmatprep.mubr.bf16.mxu0 0
        %2546 = vmatmul.mubr.bf16.gmra.mrb[0].mxu0 %v2447
        %v2547 = vpop.f32.mrb[0].mxu0
        %v2548 = vadd.f32 %v2464, %v2547
        %v2549 = vpop.f32.mrb[0].mxu0
        %v2550 = vpop.f32.mrb[0].mxu0
        %v2551 = vpop.f32.mrb[0].mxu0
        %2552 = vdwg.mxu0
        %v2553 = vmax.f32 %v2548, 0.0
        %v2554 = vpack.c.bf16 %v2553, %v2553
        %v2555 = vld [vmem:[%s9] sm:$0xf]
        %v2556 = vld [vmem:[%s9 + $0x4] sm:$0xf]
        %v2557 = vld [vmem:[%s9 + $0x8] sm:$0xf]
        %v2558 = vld [vmem:[%s9 + $0xc] sm:$0xf]
        %v2559 = vld [vmem:[%s9 + $0x10] sm:$0xf]
        %v2560 = vld [vmem:[%s9 + $0x14] sm:$0xf]
        %v2561 = vld [vmem:[%s9 + $0x18] sm:$0xf]
        %v2562 = vld [vmem:[%s9 + $0x1c] sm:$0xf]
        %v2563 = vld [vmem:[%s9 + $0x20] sm:$0xf]
        %v2564 = vld [vmem:[%s9 + $0x24] sm:$0xf]
        %v2565 = vld [vmem:[%s9 + $0x28] sm:$0xf]
        %v2566 = vld [vmem:[%s9 + $0x2c] sm:$0xf]
        %v2567 = vld [vmem:[%s9 + $0x30] sm:$0xf]
        %v2568 = vld [vmem:[%s9 + $0x34] sm:$0xf]
        %v2569 = vld [vmem:[%s9 + $0x38] sm:$0xf]
        %v2570 = vld [vmem:[%s9 + $0x3c] sm:$0xf]
        %v2571 = vld [vmem:[%s10] sm:$0x1]
        %v2588 = vunpack.c.l.b16 %v2555
        %v2589 = vunpack.c.l.b16 %v2556
        %v2590 = vunpack.c.l.b16 %v2557
        %v2591 = vunpack.c.l.b16 %v2558
        %v2592 = vunpack.c.l.b16 %v2559
        %v2593 = vunpack.c.l.b16 %v2560
        %v2594 = vunpack.c.l.b16 %v2561
        %v2595 = vunpack.c.l.b16 %v2562
        %v2596 = vunpack.c.l.b16 %v2563
        %v2597 = vunpack.c.l.b16 %v2564
        %v2598 = vunpack.c.l.b16 %v2565
        %v2599 = vunpack.c.l.b16 %v2566
        %v2600 = vunpack.c.l.b16 %v2567
        %v2601 = vunpack.c.l.b16 %v2568
        %v2602 = vunpack.c.l.b16 %v2569
        %v2603 = vunpack.c.l.b16 %v2570
        %v2604 = vpack.c.b16 %v2589, %v2588
        %v2605 = vpack.c.b16 %v2591, %v2590
        %v2606 = vpack.c.b16 %v2593, %v2592
        %v2607 = vpack.c.b16 %v2595, %v2594
        %v2608 = vpack.c.b16 %v2597, %v2596
        %v2609 = vpack.c.b16 %v2599, %v2598
        %v2610 = vpack.c.b16 %v2601, %v2600
        %v2611 = vpack.c.b16 %v2603, %v2602
        %2620 = vmatprep.subr.bf16.mxu0 0
        %2621 = vmatpush1.bf16.msra.mxu0 %v2604
        %2622 = vmatprep.subr.bf16.mxu0 0
        %2623 = vmatpush1.bf16.msra.mxu0 %v2605
        %2624 = vmatprep.subr.bf16.mxu0 0
        %2625 = vmatpush1.bf16.msra.mxu0 %v2606
        %2626 = vmatprep.subr.bf16.mxu0 0
        %2627 = vmatpush1.bf16.msra.mxu0 %v2607
        %2628 = vmatprep.subr.bf16.mxu0 0
        %2629 = vmatpush1.bf16.msra.mxu0 %v2608
        %2630 = vmatprep.subr.bf16.mxu0 0
        %2631 = vmatpush1.bf16.msra.mxu0 %v2609
        %2632 = vmatprep.subr.bf16.mxu0 0
        %2633 = vmatpush1.bf16.msra.mxu0 %v2610
        %2634 = vmatprep.subr.bf16.mxu0 0
        %2635 = vmatpush1.bf16.msra.mxu0 %v2611
        %2636 = vmatprep.subr.bf16.mxu0 0
        %2637 = vmatpush1.bf16.msra.mxu0 0
        %2638 = vmatprep.subr.bf16.mxu0 0
        %2639 = vmatpush1.bf16.msra.mxu0 0
        %2640 = vmatprep.subr.bf16.mxu0 0
        %2641 = vmatpush1.bf16.msra.mxu0 0
        %2642 = vmatprep.subr.bf16.mxu0 0
        %2643 = vmatpush1.bf16.msra.mxu0 0
        %2644 = vmatprep.subr.bf16.mxu0 0
        %2645 = vmatpush1.bf16.msra.mxu0 0
        %2646 = vmatprep.subr.bf16.mxu0 0
        %2647 = vmatpush1.bf16.msra.mxu0 0
        %2648 = vmatprep.subr.bf16.mxu0 0
        %2649 = vmatpush1.bf16.msra.mxu0 0
        %2650 = vmatprep.subr.bf16.mxu0 0
        %2651 = vmatpush1.bf16.msra.mxu0 0
        %2652 = vmatprep.mubr.bf16.mxu0 0
        %2653 = vmatmul.mubr.bf16.gmra.mrb[0].mxu0 %v2554
        %v2654 = vpop.f32.mrb[0].mxu0
        %v2655 = vadd.f32 %v2571, %v2654
        %v2656 = vpop.f32.mrb[0].mxu0
        %v2657 = vpop.f32.mrb[0].mxu0
        %v2658 = vpop.f32.mrb[0].mxu0
        %2659 = vdwg.mxu0
        %2660 = vst [vmem:[%s408] sm:$0x1] %v2655
        %s2661 = sand.u32 %s271, 1
        %s2662 = scalar_lea.sflag [#allocation4], %s2661
        %s2663 = sand.u32 %s271, 1
        %s2664 = scalar_lea.vmem [#allocation7], %s2663
        // Predicated region
        $region73: #{net_forward.1} parent=63 // pred_check
          %p2665 = pneg %p281
        $region74: #{net_forward.1} parent=63 // pred_check_branch
          %2667 = sbr.rel (%p2665) target = $region76
        $region75: #{net_forward.1} parent=63 // pred_region
          %s2669 = ssub.s32 16, 16
          %2670 = vsyncadd %s2662, %s2669
          %s2671 = smul.addr %s27, 16
          %s2672 = scalar_lea.hbm %s11, %s2671
          %s2674 = sshll.u32 %s2664, 4
          %s2675 = int_to_ptr.vmem [resolvable:$true] %s2674
          %2677 = dma.vmem_to_hbm [thread:$0]  %s2675, 16, %s2672, %s2662
        $region76: #{net_forward.1} parent=63 // pred_fallthru
          _
      $region64: #{net_forward.1} parent=5 // pred_fallthru
        _
      %p2678 = scmp.le.s32.totalorder 2, %s22
      // Predicated region
      $region77: #{net_forward.1} parent=5 // pred_check
        %p2679 = pneg %p2678
      $region78: #{net_forward.1} parent=5 // pred_check_branch
        %2681 = sbr.rel (%p2679) target = $region80
      $region79: #{net_forward.1} parent=5 // pred_region
        %s2682 = ssub.s32 %s22, 2
        // Predicated region
        $region81: #{net_forward.1} parent=79 // pred_check
          %p2683 = pneg %p287
        $region82: #{net_forward.1} parent=79 // pred_check_branch
          %2685 = sbr.rel (%p2683) target = $region84
        $region83: #{net_forward.1} parent=79 // pred_region
          %s2686 = sand.u32 %s272, 1
          %s2687 = scalar_lea.sflag [#allocation4], %s2686
          %s2688 = sand.u32 %s272, 1
          %s2689 = scalar_lea.vmem [#allocation7], %s2688
          %2690 = dma.done %s2687, 16
        $region84: #{net_forward.1} parent=79 // pred_fallthru
          _
      $region80: #{net_forward.1} parent=5 // pred_fallthru
        _
    $region6: #{net_forward.1} parent=1 // loop_footer
      %s26 = sadd.s32 1, %s22
    $region7: #{net_forward.1} parent=1 // loop_footer_branch
      %21 = sbr.rel target = $region3
    $region8: #{net_forward.1} parent=1 // loop_exit
      _
    %2691 = vsyncpa [#allocation3], 1
    %s2692 = scalar_lea.sflag [#allocation3], 1
    %2693 = vsyncpa %s2692, 1
    %2694 = vsyncpa [#allocation6], 1
    %2695 = vsyncpa [#allocation4], 1
    %s2696 = scalar_lea.sflag [#allocation4], 1
    %2697 = vsyncpa %s2696, 1

</llo_original>
